<compile_context>
chip_gen: v7x
topology: tpu7x:2x2x1
jax: 0.10.0
libtpu: 0.0.40
codegen_flags: <defaults>
</compile_context>

<pallas_src>
import jax
import jax.numpy as jnp
from jax import lax
from jax.experimental import pallas as pl
from jax.experimental.pallas import tpu as pltpu

# ---------------- model dims (TPU-tile friendly) ----------------
LATENT = 128       # p_dims_0
HIDDEN = 256       # p_dims_1
N_ITEMS = 512      # n_items
BATCH = 512        # rows per call (gridded over TB-row tiles)
TB = 128           # batch tile (rows per grid step)

# q_layers: (N_ITEMS -> HIDDEN), (HIDDEN -> 2*LATENT)  [mu half only used in eval]
# p_layers: (LATENT -> HIDDEN),  (HIDDEN -> N_ITEMS)


def multiaae_kernel(x_ref,
                    wq0_ref, bq0_ref, wq1_ref, bq1_ref,
                    wp0_ref, bp0_ref, wp1_ref, bp1_ref,
                    out_ref, z_ref):
    x = x_ref[...]                                               # (TB, N_ITEMS) f32

    # ---- encode ----
    # F.normalize(input): L2-normalize along dim=1 (clamp is equivalent up to rounding).
    sumsq = jnp.sum(x * x, axis=-1, keepdims=True)
    inv = lax.rsqrt(jnp.maximum(sumsq, 1e-24))
    h = (x * inv).astype(jnp.bfloat16)
    # dropout is identity in eval mode

    # q layer 0 + tanh  (bf16 matmul, f32 accumulate)
    h = jnp.tanh(
        jnp.dot(h, wq0_ref[...], preferred_element_type=jnp.float32) + bq0_ref[...]
    )                                                            # (TB, HIDDEN) f32

    # q layer 1, mu half only (logvar unused in eval)
    mu = (
        jnp.dot(h.astype(jnp.bfloat16), wq1_ref[...],
                preferred_element_type=jnp.float32) + bq1_ref[...]
    )                                                            # (TB, LATENT) f32

    # ---- reparameterize (eval) ----
    z_ref[...] = mu

    # ---- decode ----
    h = jnp.tanh(
        jnp.dot(mu.astype(jnp.bfloat16), wp0_ref[...],
                preferred_element_type=jnp.float32) + bp0_ref[...]
    )                                                            # (TB, HIDDEN) f32
    out_ref[...] = (
        jnp.dot(h.astype(jnp.bfloat16), wp1_ref[...],
                preferred_element_type=jnp.float32) + bp1_ref[...]
    )                                                            # (TB, N_ITEMS) f32


def multiaae_forward(x, params):
    """x: (B, N_ITEMS) f32.  Returns (recon (B, N_ITEMS), z (B, LATENT))."""
    (wq0, bq0, wq1, bq1, wp0, bp0, wp1, bp1) = params
    B = x.shape[0]
    assert B % TB == 0, "batch must be a multiple of the batch tile"

    # Trim q1 to the mu half only (eval never uses logvar).
    wq1_mu = wq1[:, :LATENT]
    bq1_mu = bq1[:, :LATENT]

    def full(arr):
        # Weight / bias blocks: full array, constant index_map -> VMEM-resident
        # across all grid steps.
        return pl.BlockSpec(arr.shape, lambda i: (0,) * arr.ndim)

    flops = 2 * B * (N_ITEMS * HIDDEN + HIDDEN * LATENT
                     + LATENT * HIDDEN + HIDDEN * N_ITEMS)
    weight_bytes = sum(int(a.size) * a.dtype.itemsize
                       for a in (wq0, bq0, wq1_mu, bq1_mu, wp0, bp0, wp1, bp1))
    bytes_accessed = (x.size * 4) + (B * N_ITEMS * 4) + (B * LATENT * 4) + weight_bytes
    cost = pl.CostEstimate(flops=flops,
                           transcendentals=B * (2 * HIDDEN + 1),
                           bytes_accessed=bytes_accessed)

    out, z = pl.pallas_call(
        multiaae_kernel,
        out_shape=(
            jax.ShapeDtypeStruct((B, N_ITEMS), jnp.float32),
            jax.ShapeDtypeStruct((B, LATENT), jnp.float32),
        ),
        grid=(B // TB,),
        in_specs=[
            pl.BlockSpec((TB, N_ITEMS), lambda i: (i, 0)),       # x tile
            full(wq0), full(bq0),
            full(wq1_mu), full(bq1_mu),
            full(wp0), full(bp0),
            full(wp1), full(bp1),
        ],
        out_specs=(
            pl.BlockSpec((TB, N_ITEMS), lambda i: (i, 0)),       # recon tile
            pl.BlockSpec((TB, LATENT), lambda i: (i, 0)),        # z tile
        ),
        compiler_params=pltpu.CompilerParams(
            dimension_semantics=("parallel",)),                  # v7x: split batch across TCs
        cost_estimate=cost,
    )(x, wq0, bq0, wq1_mu, bq1_mu, wp0, bp0, wp1, bp1)
    return out, z


def init_params(key):
    """Deterministic init mirroring MultiAAE.init_weights (Xavier-ish normal).

    Weights are stored transposed to (in, out) and cast to bf16 for the MXU;
    biases stay f32 (added after the f32-accumulated matmul).
    """
    def linear(key, d_in, d_out):
        kw, kb = jax.random.split(key)
        std = jnp.sqrt(2.0 / (d_in + d_out))
        w = (jax.random.normal(kw, (d_in, d_out), jnp.float32) * std).astype(jnp.bfloat16)
        b = jax.random.normal(kb, (1, d_out), jnp.float32) * 0.001
        return w, b

    k = jax.random.split(key, 4)
    wq0, bq0 = linear(k[0], N_ITEMS, HIDDEN)        # q layer 0
    wq1, bq1 = linear(k[1], HIDDEN, 2 * LATENT)     # q layer 1 (mu|logvar)
    wp0, bp0 = linear(k[2], LATENT, HIDDEN)         # p layer 0
    wp1, bp1 = linear(k[3], HIDDEN, N_ITEMS)        # p layer 1
    return (wq0, bq0, wq1, bq1, wp0, bp0, wp1, bp1)


def reference_forward(x, params):
    """Pure-JAX reference of the same eval-mode forward (same bf16 matmul path)."""
    (wq0, bq0, wq1, bq1, wp0, bp0, wp1, bp1) = params
    wq1_mu = wq1[:, :LATENT]
    bq1_mu = bq1[:, :LATENT]
    sumsq = jnp.sum(x * x, axis=-1, keepdims=True)
    inv = lax.rsqrt(jnp.maximum(sumsq, 1e-24))
    h = (x * inv).astype(jnp.bfloat16)
    h = jnp.tanh(jnp.dot(h, wq0, preferred_element_type=jnp.float32) + bq0)
    mu = jnp.dot(h.astype(jnp.bfloat16), wq1_mu,
                 preferred_element_type=jnp.float32) + bq1_mu
    z = mu
    h = jnp.tanh(jnp.dot(z.astype(jnp.bfloat16), wp0,
                         preferred_element_type=jnp.float32) + bp0)
    out = jnp.dot(h.astype(jnp.bfloat16), wp1,
                  preferred_element_type=jnp.float32) + bp1
    return out, z


if __name__ == "__main__":
    key = jax.random.PRNGKey(0)
    kx, kp = jax.random.split(key)

    # Synthetic "user x item" interaction-like input (non-negative, sparse-ish).
    x = (jax.random.uniform(kx, (BATCH, N_ITEMS), jnp.float32) > 0.9).astype(jnp.float32)

    params = init_params(kp)

    out, z = multiaae_forward(x, params)
    jax.block_until_ready(out)
    jax.block_until_ready(z)

    out_ref, z_ref = reference_forward(x, params)
    assert jnp.allclose(out, out_ref, atol=1e-2, rtol=1e-2), "recon mismatch"
    assert jnp.allclose(z, z_ref, atol=1e-2, rtol=1e-2), "z mismatch"

    print("KERNEL_OK")
</pallas_src>

<mosaic_0001>
module attributes {stable_mosaic.version = 11 : i64} {
  func.func @multiaae_kernel(%arg0: i32, %arg1: memref<128x512xf32, #tpu.memory_space<vmem>>, %arg2: memref<512x256xbf16, #tpu.memory_space<vmem>>, %arg3: memref<1x256xf32, #tpu.memory_space<vmem>>, %arg4: memref<256x128xbf16, #tpu.memory_space<vmem>>, %arg5: memref<1x128xf32, #tpu.memory_space<vmem>>, %arg6: memref<128x256xbf16, #tpu.memory_space<vmem>>, %arg7: memref<1x256xf32, #tpu.memory_space<vmem>>, %arg8: memref<256x512xbf16, #tpu.memory_space<vmem>>, %arg9: memref<1x512xf32, #tpu.memory_space<vmem>>, %arg10: memref<128x512xf32, #tpu.memory_space<vmem>>, %arg11: memref<128x128xf32, #tpu.memory_space<vmem>>) attributes {dimension_semantics = [#tpu.dimension_semantics<parallel>], iteration_bounds = array<i64: 4>, scalar_prefetch = 0 : i64, scratch_operands = 0 : i64, tpu.core_type = #tpu.core_type<tc>, window_params = [{transform_indices = @transform_0, window_bounds = array<i64: 128, 512>}, {pipeline_mode = #tpu.pipeline_mode<synchronous>, transform_indices = @transform_1, window_bounds = array<i64: 512, 256>}, {pipeline_mode = #tpu.pipeline_mode<synchronous>, transform_indices = @transform_2, window_bounds = array<i64: 1, 256>}, {pipeline_mode = #tpu.pipeline_mode<synchronous>, transform_indices = @transform_3, window_bounds = array<i64: 256, 128>}, {pipeline_mode = #tpu.pipeline_mode<synchronous>, transform_indices = @transform_4, window_bounds = array<i64: 1, 128>}, {pipeline_mode = #tpu.pipeline_mode<synchronous>, transform_indices = @transform_5, window_bounds = array<i64: 128, 256>}, {pipeline_mode = #tpu.pipeline_mode<synchronous>, transform_indices = @transform_6, window_bounds = array<i64: 1, 256>}, {pipeline_mode = #tpu.pipeline_mode<synchronous>, transform_indices = @transform_7, window_bounds = array<i64: 256, 512>}, {pipeline_mode = #tpu.pipeline_mode<synchronous>, transform_indices = @transform_8, window_bounds = array<i64: 1, 512>}, {transform_indices = @transform_9, window_bounds = array<i64: 128, 512>}, {transform_indices = @transform_10, window_bounds = array<i64: 128, 128>}]} {
    %c0 = arith.constant 0 : index
    %c0_0 = arith.constant 0 : index
    %0 = vector.load %arg1[%c0, %c0_0] : memref<128x512xf32, #tpu.memory_space<vmem>>, vector<128x512xf32>
    %1 = arith.mulf %0, %0 : vector<128x512xf32>
    %cst = arith.constant dense<0.000000e+00> : vector<128xf32>
    %2 = vector.multi_reduction <add>, %1, %cst [1] : vector<128x512xf32> to vector<128xf32>
    %3 = vector.shape_cast %2 : vector<128xf32> to vector<128x1xf32>
    %cst_1 = arith.constant 1.000000e-24 : f32
    %4 = vector.broadcast %cst_1 : f32 to vector<128x1xf32>
    %5 = arith.maximumf %3, %4 : vector<128x1xf32>
    %6 = math.rsqrt %5 : vector<128x1xf32>
    %7 = vector.broadcast %6 : vector<128x1xf32> to vector<128x512xf32>
    %8 = arith.mulf %0, %7 : vector<128x512xf32>
    %9 = arith.truncf %8 : vector<128x512xf32> to vector<128x512xbf16>
    %c0_2 = arith.constant 0 : index
    %c0_3 = arith.constant 0 : index
    %10 = vector.load %arg2[%c0_2, %c0_3] : memref<512x256xbf16, #tpu.memory_space<vmem>>, vector<512x256xbf16>
    %cst_4 = arith.constant dense<0.000000e+00> : vector<128x256xf32>
    %11 = tpu.matmul %9, %10, %cst_4 {dimension_numbers = #tpu.dot_dimension_numbers<[1], [0], [0], [1], [0, 0, 1, 1], [], []>} : vector<128x512xbf16>, vector<512x256xbf16>, vector<128x256xf32> -> vector<128x256xf32>
    %c0_5 = arith.constant 0 : index
    %c0_6 = arith.constant 0 : index
    %12 = vector.load %arg3[%c0_5, %c0_6] : memref<1x256xf32, #tpu.memory_space<vmem>>, vector<1x256xf32>
    %13 = vector.broadcast %12 : vector<1x256xf32> to vector<128x256xf32>
    %14 = arith.addf %11, %13 : vector<128x256xf32>
    %15 = math.tanh %14 : vector<128x256xf32>
    %16 = arith.truncf %15 : vector<128x256xf32> to vector<128x256xbf16>
    %c0_7 = arith.constant 0 : index
    %c0_8 = arith.constant 0 : index
    %17 = vector.load %arg4[%c0_7, %c0_8] : memref<256x128xbf16, #tpu.memory_space<vmem>>, vector<256x128xbf16>
    %cst_9 = arith.constant dense<0.000000e+00> : vector<128x128xf32>
    %18 = tpu.matmul %16, %17, %cst_9 {dimension_numbers = #tpu.dot_dimension_numbers<[1], [0], [0], [1], [0, 0, 1, 1], [], []>} : vector<128x256xbf16>, vector<256x128xbf16>, vector<128x128xf32> -> vector<128x128xf32>
    %c0_10 = arith.constant 0 : index
    %c0_11 = arith.constant 0 : index
    %19 = vector.load %arg5[%c0_10, %c0_11] : memref<1x128xf32, #tpu.memory_space<vmem>>, vector<1x128xf32>
    %20 = vector.broadcast %19 : vector<1x128xf32> to vector<128x128xf32>
    %21 = arith.addf %18, %20 : vector<128x128xf32>
    %c0_12 = arith.constant 0 : index
    %c0_13 = arith.constant 0 : index
    %22 = vector.load %arg11[%c0_12, %c0_13] : memref<128x128xf32, #tpu.memory_space<vmem>>, vector<128x128xf32>
    tpu.vector_store %arg11[%c0_12, %c0_13], %21 {strides = array<i32>} : memref<128x128xf32, #tpu.memory_space<vmem>>, vector<128x128xf32>,
    %23 = arith.truncf %21 : vector<128x128xf32> to vector<128x128xbf16>
    %c0_14 = arith.constant 0 : index
    %c0_15 = arith.constant 0 : index
    %24 = vector.load %arg6[%c0_14, %c0_15] : memref<128x256xbf16, #tpu.memory_space<vmem>>, vector<128x256xbf16>
    %cst_16 = arith.constant dense<0.000000e+00> : vector<128x256xf32>
    %25 = tpu.matmul %23, %24, %cst_16 {dimension_numbers = #tpu.dot_dimension_numbers<[1], [0], [0], [1], [0, 0, 1, 1], [], []>} : vector<128x128xbf16>, vector<128x256xbf16>, vector<128x256xf32> -> vector<128x256xf32>
    %c0_17 = arith.constant 0 : index
    %c0_18 = arith.constant 0 : index
    %26 = vector.load %arg7[%c0_17, %c0_18] : memref<1x256xf32, #tpu.memory_space<vmem>>, vector<1x256xf32>
    %27 = vector.broadcast %26 : vector<1x256xf32> to vector<128x256xf32>
    %28 = arith.addf %25, %27 : vector<128x256xf32>
    %29 = math.tanh %28 : vector<128x256xf32>
    %30 = arith.truncf %29 : vector<128x256xf32> to vector<128x256xbf16>
    %c0_19 = arith.constant 0 : index
    %c0_20 = arith.constant 0 : index
    %31 = vector.load %arg8[%c0_19, %c0_20] : memref<256x512xbf16, #tpu.memory_space<vmem>>, vector<256x512xbf16>
    %cst_21 = arith.constant dense<0.000000e+00> : vector<128x512xf32>
    %32 = tpu.matmul %30, %31, %cst_21 {dimension_numbers = #tpu.dot_dimension_numbers<[1], [0], [0], [1], [0, 0, 1, 1], [], []>} : vector<128x256xbf16>, vector<256x512xbf16>, vector<128x512xf32> -> vector<128x512xf32>
    %c0_22 = arith.constant 0 : index
    %c0_23 = arith.constant 0 : index
    %33 = vector.load %arg9[%c0_22, %c0_23] : memref<1x512xf32, #tpu.memory_space<vmem>>, vector<1x512xf32>
    %34 = vector.broadcast %33 : vector<1x512xf32> to vector<128x512xf32>
    %35 = arith.addf %32, %34 : vector<128x512xf32>
    %c0_24 = arith.constant 0 : index
    %c0_25 = arith.constant 0 : index
    %36 = vector.load %arg10[%c0_24, %c0_25] : memref<128x512xf32, #tpu.memory_space<vmem>>, vector<128x512xf32>
    tpu.vector_store %arg10[%c0_24, %c0_25], %35 {strides = array<i32>} : memref<128x512xf32, #tpu.memory_space<vmem>>, vector<128x512xf32>,
    return
  }
  func.func @transform_0(%arg0: i32) -> (i32, i32) {
    %c0_i32 = arith.constant 0 : i32
    %c0_i32_0 = arith.constant 0 : i32
    return %arg0, %c0_i32 : i32, i32
  }
  func.func @transform_1(%arg0: i32) -> (i32, i32) {
    %c0_i32 = arith.constant 0 : i32
    %c0_i32_0 = arith.constant 0 : i32
    %c0_i32_1 = arith.constant 0 : i32
    return %c0_i32, %c0_i32_0 : i32, i32
  }
  func.func @transform_2(%arg0: i32) -> (i32, i32) {
    %c0_i32 = arith.constant 0 : i32
    %c0_i32_0 = arith.constant 0 : i32
    %c0_i32_1 = arith.constant 0 : i32
    return %c0_i32, %c0_i32_0 : i32, i32
  }
  func.func @transform_3(%arg0: i32) -> (i32, i32) {
    %c0_i32 = arith.constant 0 : i32
    %c0_i32_0 = arith.constant 0 : i32
    %c0_i32_1 = arith.constant 0 : i32
    return %c0_i32, %c0_i32_0 : i32, i32
  }
  func.func @transform_4(%arg0: i32) -> (i32, i32) {
    %c0_i32 = arith.constant 0 : i32
    %c0_i32_0 = arith.constant 0 : i32
    %c0_i32_1 = arith.constant 0 : i32
    return %c0_i32, %c0_i32_0 : i32, i32
  }
  func.func @transform_5(%arg0: i32) -> (i32, i32) {
    %c0_i32 = arith.constant 0 : i32
    %c0_i32_0 = arith.constant 0 : i32
    %c0_i32_1 = arith.constant 0 : i32
    return %c0_i32, %c0_i32_0 : i32, i32
  }
  func.func @transform_6(%arg0: i32) -> (i32, i32) {
    %c0_i32 = arith.constant 0 : i32
    %c0_i32_0 = arith.constant 0 : i32
    %c0_i32_1 = arith.constant 0 : i32
    return %c0_i32, %c0_i32_0 : i32, i32
  }
  func.func @transform_7(%arg0: i32) -> (i32, i32) {
    %c0_i32 = arith.constant 0 : i32
    %c0_i32_0 = arith.constant 0 : i32
    %c0_i32_1 = arith.constant 0 : i32
    return %c0_i32, %c0_i32_0 : i32, i32
  }
  func.func @transform_8(%arg0: i32) -> (i32, i32) {
    %c0_i32 = arith.constant 0 : i32
    %c0_i32_0 = arith.constant 0 : i32
    %c0_i32_1 = arith.constant 0 : i32
    return %c0_i32, %c0_i32_0 : i32, i32
  }
  func.func @transform_9(%arg0: i32) -> (i32, i32) {
    %c0_i32 = arith.constant 0 : i32
    %c0_i32_0 = arith.constant 0 : i32
    return %arg0, %c0_i32 : i32, i32
  }
  func.func @transform_10(%arg0: i32) -> (i32, i32) {
    %c0_i32 = arith.constant 0 : i32
    %c0_i32_0 = arith.constant 0 : i32
    return %arg0, %c0_i32 : i32, i32
  }
}

</mosaic_0001>

<llo_original>
// kernel: tpu_custom_call.1
$region0: #{tpu_custom_call.1}
  #allocation0 [shape = 'u32[]', space=smem, size = 0x4, offset = 0x4, fixed_abs, tag = 'smem constant byte address 0x4 - core index']
  #allocation1 [shape = 'u32[144,128]{1,0:T(1,128)}', space=vmem, size = 0x12000, scoped, tag = 'internal scratch']
  %s0 = inlined_call_operand.hbm [shape: f32[512,512], index: 0, kind: input, shape index: {}]
  %s1 = inlined_call_operand.hbm [shape: bf16[512,256], index: 1, kind: input, shape index: {}]
  %s2 = inlined_call_operand.vmem [shape: f32[1,256], index: 2, kind: input, shape index: {}]
  %s3 = inlined_call_operand.hbm [shape: bf16[256,128], index: 3, kind: input, shape index: {}]
  %s4 = inlined_call_operand.vmem [shape: f32[1,128], index: 4, kind: input, shape index: {}]
  %s5 = inlined_call_operand.hbm [shape: bf16[128,256], index: 5, kind: input, shape index: {}]
  %s6 = inlined_call_operand.vmem [shape: f32[1,256], index: 6, kind: input, shape index: {}]
  %s7 = inlined_call_operand.hbm [shape: bf16[256,512], index: 7, kind: input, shape index: {}]
  %s8 = inlined_call_operand.vmem [shape: f32[1,512], index: 8, kind: input, shape index: {}]
  %s9 = inlined_call_operand.hbm [shape: f32[512,512], index: 9, kind: output, shape index: {0}]
  %s10 = inlined_call_operand.hbm [shape: f32[512,128], index: 10, kind: output, shape index: {1}]
  %11 = xla_tuple %s9, %s10
  %s12 = sld [smem:[#allocation0]]
  $region97: #{tpu_custom_call.1} parent=0
    _
  %s14 = ssub.s32 1, %s12
  %s15 = scalar_select 0, %s14, %s12
  $region1: #{tpu_custom_call.1} parent=0
    #allocation2 [shape = 'u8[524288]{0}', space=vmem, size = 0x80000, scoped, tag = 'input window, operand 0']
    #allocation3 [shape = 's32[2]{0}', space=sflag, size = 0x8, scoped, tag = 'scoped memory for tpu_custom_call.1']
    #allocation4 [shape = 's32[2]{0}', space=sflag, size = 0x8, scoped, tag = 'scoped memory for tpu_custom_call.1']
    #allocation5 [shape = 'u8[262144]{0}', space=vmem, size = 0x40000, scoped, tag = 'input window, operand 1, single buffered']
    #allocation6 [shape = 's32[1]{0}', space=sflag, size = 0x4, scoped, tag = 'scoped memory for tpu_custom_call.1']
    #allocation7 [shape = 'u8[65536]{0}', space=vmem, size = 0x10000, scoped, tag = 'input window, operand 3, single buffered']
    #allocation8 [shape = 'u8[65536]{0}', space=vmem, size = 0x10000, scoped, tag = 'input window, operand 5, single buffered']
    #allocation9 [shape = 's32[1]{0}', space=sflag, size = 0x4, scoped, tag = 'scoped memory for tpu_custom_call.1']
    #allocation10 [shape = 'u8[262144]{0}', space=vmem, size = 0x40000, scoped, tag = 'input window, operand 7, single buffered']
    #allocation11 [shape = 'u8[524288]{0}', space=vmem, size = 0x80000, scoped, tag = 'output window, operand 0']
    #allocation12 [shape = 'u8[131072]{0}', space=vmem, size = 0x20000, scoped, tag = 'output window, operand 1']
    #allocation13 [shape = 's32[2]{0}', space=sflag, size = 0x8, scoped, tag = 'scoped memory for tpu_custom_call.1']
    %16 = vsyncpa [#allocation3], 0
    %s17 = scalar_lea.sflag [#allocation3], 1
    %18 = vsyncpa %s17, 0
    %19 = vsyncpa [#allocation6], 0
    %20 = vsyncpa [#allocation9], 0
    %21 = vsyncpa [#allocation4], 0
    %s22 = scalar_lea.sflag [#allocation4], 1
    %23 = vsyncpa %s22, 0
    %24 = vsyncpa [#allocation13], 0
    %s25 = scalar_lea.sflag [#allocation13], 1
    %26 = vsyncpa %s25, 0
    loop: start=0, step=1, limit=6
    $region2: #{tpu_custom_call.1} parent=1 // loop_pre_header
      _
    $region3: #{tpu_custom_call.1} parent=1 // loop_header
      %s28 = sphi 0, %s32
      %p29 = scmp.ge.s32.totalorder %s28, 6
      %s38 = sphi 0, %s40
      %s41 = sphi 0, %s38
      %s42 = sphi 0, %s41
      %s58 = sphi 0, %s42
      %s62 = sphi 0, %s62
      %s64 = sphi 0, %s62
      %s65 = sphi 0, %s64
      %s79 = sphi 0, %s65
      %s83 = sphi 0, %s83
      %s85 = sphi 0, %s83
      %s86 = sphi 0, %s85
      %s100 = sphi 0, %s86
      %s104 = sphi 0, %s104
      %s106 = sphi 0, %s104
      %s107 = sphi 0, %s106
      %s121 = sphi 0, %s107
      %s125 = sphi 0, %s125
      %s127 = sphi 0, %s125
      %s128 = sphi 0, %s127
      %s142 = sphi 0, %s128
      %s146 = sphi 0, %s146
      %s148 = sphi 0, %s146
      %s149 = sphi 0, %s148
      %s163 = sphi 0, %s149
      %s167 = sphi 0, %s167
      %s169 = sphi 0, %s167
      %s170 = sphi 0, %s169
      %s184 = sphi 0, %s170
      %s188 = sphi 0, %s188
      %s190 = sphi 0, %s188
      %s191 = sphi 0, %s190
      %s205 = sphi 0, %s191
      %s209 = sphi 0, %s209
      %s211 = sphi 0, %s209
      %s212 = sphi 0, %s211
      %s226 = sphi 0, %s212
      %s232 = sphi 0, %s234
      %s235 = sphi 0, %s232
      %s236 = sphi 0, %s235
      %s252 = sphi 0, %s236
      %s258 = sphi 0, %s260
      %s261 = sphi 0, %s258
      %s262 = sphi 0, %s261
      %s278 = sphi 0, %s262
    $region4: #{tpu_custom_call.1} parent=1 // loop_header_branch
      %31 = sbr.rel (%p29) target = $region8
    $region5: #{tpu_custom_call.1} parent=1 // loop_body
      %s33 = ssub.s32 %s28, 1
      %s34 = ssub.s32 %s28, 2
      %s35 = sadd.s32 %s28, 1
      %s36 = ssub.s32 %s28, %s35
      %p37 = scmp.eq.s32.totalorder %s36, 0
      %s39 = sadd.s32 %s38, 1
      %s40 = scalar_select %p37, %s38, %s39
      %p43 = pneg %p37
      %p44 = scmp.eq.s32.totalorder %s28, 3
      %p45 = por %p43, %p44
      %p46 = scmp.ne.s32.totalorder %s38, %s41
      %p47 = scmp.eq.s32.totalorder %s28, 0
      %p48 = por %p46, %p47
      %p49 = scmp.ne.s32.totalorder %s38, %s41
      %p50 = scmp.eq.s32.totalorder %s33, 3
      %p51 = por %p49, %p50
      %p52 = scmp.ne.s32.totalorder %s41, %s42
      %p53 = scmp.eq.s32.totalorder %s33, 0
      %p54 = por %p52, %p53
      %p55 = scmp.ne.s32.totalorder %s41, %s42
      %p56 = scmp.eq.s32.totalorder %s34, 3
      %p57 = por %p55, %p56
      %p59 = scmp.ne.s32.totalorder %s42, %s58
      %p60 = scmp.eq.s32.totalorder %s34, 0
      %p61 = por %p59, %p60
      %s63 = sadd.s32 %s62, 1
      %p66 = scmp.eq.s32.totalorder %s28, 3
      %p67 = scmp.ne.s32.totalorder %s62, %s64
      %p68 = scmp.eq.s32.totalorder %s28, 0
      %p69 = por %p67, %p68
      %p70 = scmp.ne.s32.totalorder %s62, %s64
      %p71 = scmp.eq.s32.totalorder %s33, 3
      %p72 = por %p70, %p71
      %p73 = scmp.ne.s32.totalorder %s64, %s65
      %p74 = scmp.eq.s32.totalorder %s33, 0
      %p75 = por %p73, %p74
      %p76 = scmp.ne.s32.totalorder %s64, %s65
      %p77 = scmp.eq.s32.totalorder %s34, 3
      %p78 = por %p76, %p77
      %p80 = scmp.ne.s32.totalorder %s65, %s79
      %p81 = scmp.eq.s32.totalorder %s34, 0
      %p82 = por %p80, %p81
      %s84 = sadd.s32 %s83, 1
      %p87 = scmp.eq.s32.totalorder %s28, 3
      %p88 = scmp.ne.s32.totalorder %s83, %s85
      %p89 = scmp.eq.s32.totalorder %s28, 0
      %p90 = por %p88, %p89
      %p91 = scmp.ne.s32.totalorder %s83, %s85
      %p92 = scmp.eq.s32.totalorder %s33, 3
      %p93 = por %p91, %p92
      %p94 = scmp.ne.s32.totalorder %s85, %s86
      %p95 = scmp.eq.s32.totalorder %s33, 0
      %p96 = por %p94, %p95
      %p97 = scmp.ne.s32.totalorder %s85, %s86
      %p98 = scmp.eq.s32.totalorder %s34, 3
      %p99 = por %p97, %p98
      %p101 = scmp.ne.s32.totalorder %s86, %s100
      %p102 = scmp.eq.s32.totalorder %s34, 0
      %p103 = por %p101, %p102
      %s105 = sadd.s32 %s104, 1
      %p108 = scmp.eq.s32.totalorder %s28, 3
      %p109 = scmp.ne.s32.totalorder %s104, %s106
      %p110 = scmp.eq.s32.totalorder %s28, 0
      %p111 = por %p109, %p110
      %p112 = scmp.ne.s32.totalorder %s104, %s106
      %p113 = scmp.eq.s32.totalorder %s33, 3
      %p114 = por %p112, %p113
      %p115 = scmp.ne.s32.totalorder %s106, %s107
      %p116 = scmp.eq.s32.totalorder %s33, 0
      %p117 = por %p115, %p116
      %p118 = scmp.ne.s32.totalorder %s106, %s107
      %p119 = scmp.eq.s32.totalorder %s34, 3
      %p120 = por %p118, %p119
      %p122 = scmp.ne.s32.totalorder %s107, %s121
      %p123 = scmp.eq.s32.totalorder %s34, 0
      %p124 = por %p122, %p123
      %s126 = sadd.s32 %s125, 1
      %p129 = scmp.eq.s32.totalorder %s28, 3
      %p130 = scmp.ne.s32.totalorder %s125, %s127
      %p131 = scmp.eq.s32.totalorder %s28, 0
      %p132 = por %p130, %p131
      %p133 = scmp.ne.s32.totalorder %s125, %s127
      %p134 = scmp.eq.s32.totalorder %s33, 3
      %p135 = por %p133, %p134
      %p136 = scmp.ne.s32.totalorder %s127, %s128
      %p137 = scmp.eq.s32.totalorder %s33, 0
      %p138 = por %p136, %p137
      %p139 = scmp.ne.s32.totalorder %s127, %s128
      %p140 = scmp.eq.s32.totalorder %s34, 3
      %p141 = por %p139, %p140
      %p143 = scmp.ne.s32.totalorder %s128, %s142
      %p144 = scmp.eq.s32.totalorder %s34, 0
      %p145 = por %p143, %p144
      %s147 = sadd.s32 %s146, 1
      %p150 = scmp.eq.s32.totalorder %s28, 3
      %p151 = scmp.ne.s32.totalorder %s146, %s148
      %p152 = scmp.eq.s32.totalorder %s28, 0
      %p153 = por %p151, %p152
      %p154 = scmp.ne.s32.totalorder %s146, %s148
      %p155 = scmp.eq.s32.totalorder %s33, 3
      %p156 = por %p154, %p155
      %p157 = scmp.ne.s32.totalorder %s148, %s149
      %p158 = scmp.eq.s32.totalorder %s33, 0
      %p159 = por %p157, %p158
      %p160 = scmp.ne.s32.totalorder %s148, %s149
      %p161 = scmp.eq.s32.totalorder %s34, 3
      %p162 = por %p160, %p161
      %p164 = scmp.ne.s32.totalorder %s149, %s163
      %p165 = scmp.eq.s32.totalorder %s34, 0
      %p166 = por %p164, %p165
      %s168 = sadd.s32 %s167, 1
      %p171 = scmp.eq.s32.totalorder %s28, 3
      %p172 = scmp.ne.s32.totalorder %s167, %s169
      %p173 = scmp.eq.s32.totalorder %s28, 0
      %p174 = por %p172, %p173
      %p175 = scmp.ne.s32.totalorder %s167, %s169
      %p176 = scmp.eq.s32.totalorder %s33, 3
      %p177 = por %p175, %p176
      %p178 = scmp.ne.s32.totalorder %s169, %s170
      %p179 = scmp.eq.s32.totalorder %s33, 0
      %p180 = por %p178, %p179
      %p181 = scmp.ne.s32.totalorder %s169, %s170
      %p182 = scmp.eq.s32.totalorder %s34, 3
      %p183 = por %p181, %p182
      %p185 = scmp.ne.s32.totalorder %s170, %s184
      %p186 = scmp.eq.s32.totalorder %s34, 0
      %p187 = por %p185, %p186
      %s189 = sadd.s32 %s188, 1
      %p192 = scmp.eq.s32.totalorder %s28, 3
      %p193 = scmp.ne.s32.totalorder %s188, %s190
      %p194 = scmp.eq.s32.totalorder %s28, 0
      %p195 = por %p193, %p194
      %p196 = scmp.ne.s32.totalorder %s188, %s190
      %p197 = scmp.eq.s32.totalorder %s33, 3
      %p198 = por %p196, %p197
      %p199 = scmp.ne.s32.totalorder %s190, %s191
      %p200 = scmp.eq.s32.totalorder %s33, 0
      %p201 = por %p199, %p200
      %p202 = scmp.ne.s32.totalorder %s190, %s191
      %p203 = scmp.eq.s32.totalorder %s34, 3
      %p204 = por %p202, %p203
      %p206 = scmp.ne.s32.totalorder %s191, %s205
      %p207 = scmp.eq.s32.totalorder %s34, 0
      %p208 = por %p206, %p207
      %s210 = sadd.s32 %s209, 1
      %p213 = scmp.eq.s32.totalorder %s28, 3
      %p214 = scmp.ne.s32.totalorder %s209, %s211
      %p215 = scmp.eq.s32.totalorder %s28, 0
      %p216 = por %p214, %p215
      %p217 = scmp.ne.s32.totalorder %s209, %s211
      %p218 = scmp.eq.s32.totalorder %s33, 3
      %p219 = por %p217, %p218
      %p220 = scmp.ne.s32.totalorder %s211, %s212
      %p221 = scmp.eq.s32.totalorder %s33, 0
      %p222 = por %p220, %p221
      %p223 = scmp.ne.s32.totalorder %s211, %s212
      %p224 = scmp.eq.s32.totalorder %s34, 3
      %p225 = por %p223, %p224
      %p227 = scmp.ne.s32.totalorder %s212, %s226
      %p228 = scmp.eq.s32.totalorder %s34, 0
      %p229 = por %p227, %p228
      %s230 = ssub.s32 %s28, %s35
      %p231 = scmp.eq.s32.totalorder %s230, 0
      %s233 = sadd.s32 %s232, 1
      %s234 = scalar_select %p231, %s232, %s233
      %p237 = pneg %p231
      %p238 = scmp.eq.s32.totalorder %s28, 3
      %p239 = por %p237, %p238
      %p240 = scmp.ne.s32.totalorder %s232, %s235
      %p241 = scmp.eq.s32.totalorder %s28, 0
      %p242 = por %p240, %p241
      %p243 = scmp.ne.s32.totalorder %s232, %s235
      %p244 = scmp.eq.s32.totalorder %s33, 3
      %p245 = por %p243, %p244
      %p246 = scmp.ne.s32.totalorder %s235, %s236
      %p247 = scmp.eq.s32.totalorder %s33, 0
      %p248 = por %p246, %p247
      %p249 = scmp.ne.s32.totalorder %s235, %s236
      %p250 = scmp.eq.s32.totalorder %s34, 3
      %p251 = por %p249, %p250
      %p253 = scmp.ne.s32.totalorder %s236, %s252
      %p254 = scmp.eq.s32.totalorder %s34, 0
      %p255 = por %p253, %p254
      %s256 = ssub.s32 %s28, %s35
      %p257 = scmp.eq.s32.totalorder %s256, 0
      %s259 = sadd.s32 %s258, 1
      %s260 = scalar_select %p257, %s258, %s259
      %p263 = pneg %p257
      %p264 = scmp.eq.s32.totalorder %s28, 3
      %p265 = por %p263, %p264
      %p266 = scmp.ne.s32.totalorder %s258, %s261
      %p267 = scmp.eq.s32.totalorder %s28, 0
      %p268 = por %p266, %p267
      %p269 = scmp.ne.s32.totalorder %s258, %s261
      %p270 = scmp.eq.s32.totalorder %s33, 3
      %p271 = por %p269, %p270
      %p272 = scmp.ne.s32.totalorder %s261, %s262
      %p273 = scmp.eq.s32.totalorder %s33, 0
      %p274 = por %p272, %p273
      %p275 = scmp.ne.s32.totalorder %s261, %s262
      %p276 = scmp.eq.s32.totalorder %s34, 3
      %p277 = por %p275, %p276
      %p279 = scmp.ne.s32.totalorder %s262, %s278
      %p280 = scmp.eq.s32.totalorder %s34, 0
      %p281 = por %p279, %p280
      %p282 = scmp.le.s32.totalorder 1, %s28
      %p283 = scmp.lt.s32.totalorder %s28, 5
      %p284 = pnand %p282, %p283
      %p285 = pneg %p284
      // Predicated region
      $region9: #{tpu_custom_call.1} parent=5 // pred_check
        _
      $region10: #{tpu_custom_call.1} parent=5 // pred_check_branch
        %287 = sbr.rel (%p284) target = $region12
      $region11: #{tpu_custom_call.1} parent=5 // pred_region
        %s288 = ssub.s32 %s28, 1
        // Predicated region
        $region13: #{tpu_custom_call.1} parent=11 // pred_check
          %p289 = pneg %p75
        $region14: #{tpu_custom_call.1} parent=11 // pred_check_branch
          %291 = sbr.rel (%p289) target = $region16
        $region15: #{tpu_custom_call.1} parent=11 // pred_region
          %s293 = ssub.s32 8192, 8192
          %294 = vsyncadd [#allocation6], %s293
          %s295 = sshll.u32 [#allocation5], 4
          %s296 = int_to_ptr.vmem [resolvable:$true] %s295
          %301 = dma.hbm_to_vmem [thread:$0]  %s1, 8192, %s296, [#allocation6], 128, 128, 8
        $region16: #{tpu_custom_call.1} parent=11 // pred_fallthru
          _
        // Predicated region
        $region17: #{tpu_custom_call.1} parent=11 // pred_check
          %p302 = pneg %p96
        $region18: #{tpu_custom_call.1} parent=11 // pred_check_branch
          %304 = sbr.rel (%p302) target = $region20
        $region19: #{tpu_custom_call.1} parent=11 // pred_region
          _
        $region20: #{tpu_custom_call.1} parent=11 // pred_fallthru
          _
        // Predicated region
        $region21: #{tpu_custom_call.1} parent=11 // pred_check
          %p305 = pneg %p117
        $region22: #{tpu_custom_call.1} parent=11 // pred_check_branch
          %307 = sbr.rel (%p305) target = $region24
        $region23: #{tpu_custom_call.1} parent=11 // pred_region
          %s309 = ssub.s32 2048, 2048
          %310 = vsyncadd [#allocation6], %s309
          %s311 = sshll.u32 [#allocation7], 4
          %s312 = int_to_ptr.vmem [resolvable:$true] %s311
          %317 = dma.hbm_to_vmem [thread:$0]  %s3, 2048, %s312, [#allocation6], 64, 64, 4
        $region24: #{tpu_custom_call.1} parent=11 // pred_fallthru
          _
        // Predicated region
        $region25: #{tpu_custom_call.1} parent=11 // pred_check
          %p318 = pneg %p138
        $region26: #{tpu_custom_call.1} parent=11 // pred_check_branch
          %320 = sbr.rel (%p318) target = $region28
        $region27: #{tpu_custom_call.1} parent=11 // pred_region
          _
        $region28: #{tpu_custom_call.1} parent=11 // pred_fallthru
          _
        // Predicated region
        $region29: #{tpu_custom_call.1} parent=11 // pred_check
          %p321 = pneg %p159
        $region30: #{tpu_custom_call.1} parent=11 // pred_check_branch
          %323 = sbr.rel (%p321) target = $region32
        $region31: #{tpu_custom_call.1} parent=11 // pred_region
          %s325 = ssub.s32 2048, 2048
          %326 = vsyncadd [#allocation9], %s325
          %s327 = sshll.u32 [#allocation8], 4
          %s328 = int_to_ptr.vmem [resolvable:$true] %s327
          %333 = dma.hbm_to_vmem [thread:$0]  %s5, 2048, %s328, [#allocation9], 128, 128, 8
        $region32: #{tpu_custom_call.1} parent=11 // pred_fallthru
          _
        // Predicated region
        $region33: #{tpu_custom_call.1} parent=11 // pred_check
          %p334 = pneg %p180
        $region34: #{tpu_custom_call.1} parent=11 // pred_check_branch
          %336 = sbr.rel (%p334) target = $region36
        $region35: #{tpu_custom_call.1} parent=11 // pred_region
          _
        $region36: #{tpu_custom_call.1} parent=11 // pred_fallthru
          _
        // Predicated region
        $region37: #{tpu_custom_call.1} parent=11 // pred_check
          %p337 = pneg %p201
        $region38: #{tpu_custom_call.1} parent=11 // pred_check_branch
          %339 = sbr.rel (%p337) target = $region40
        $region39: #{tpu_custom_call.1} parent=11 // pred_region
          %s341 = ssub.s32 8192, 8192
          %342 = vsyncadd [#allocation9], %s341
          %s343 = sshll.u32 [#allocation10], 4
          %s344 = int_to_ptr.vmem [resolvable:$true] %s343
          %349 = dma.hbm_to_vmem [thread:$0]  %s7, 8192, %s344, [#allocation9], 256, 256, 16
        $region40: #{tpu_custom_call.1} parent=11 // pred_fallthru
          _
        // Predicated region
        $region41: #{tpu_custom_call.1} parent=11 // pred_check
          %p350 = pneg %p222
        $region42: #{tpu_custom_call.1} parent=11 // pred_check_branch
          %352 = sbr.rel (%p350) target = $region44
        $region43: #{tpu_custom_call.1} parent=11 // pred_region
          _
        $region44: #{tpu_custom_call.1} parent=11 // pred_fallthru
          _
      $region12: #{tpu_custom_call.1} parent=5 // pred_fallthru
        _
      %p353 = scmp.lt.s32.totalorder %s28, 4
      // Predicated region
      $region45: #{tpu_custom_call.1} parent=5 // pred_check
        %p354 = pneg %p353
      $region46: #{tpu_custom_call.1} parent=5 // pred_check_branch
        %356 = sbr.rel (%p354) target = $region48
      $region47: #{tpu_custom_call.1} parent=5 // pred_region
        // Predicated region
        $region49: #{tpu_custom_call.1} parent=47 // pred_check
          %p357 = pneg %p48
        $region50: #{tpu_custom_call.1} parent=47 // pred_check_branch
          %359 = sbr.rel (%p357) target = $region52
        $region51: #{tpu_custom_call.1} parent=47 // pred_region
          %s360 = sand.u32 %s38, 1
          %s361 = scalar_lea.sflag [#allocation3], %s360
          %s362 = sand.u32 %s38, 1
          %s363 = smul.addr %s362, 512
          %s364 = scalar_lea.vmem [#allocation2], %s363
          %s365 = smul.u32 16, %s28
          %s367 = ssub.s32 8192, 8192
          %368 = vsyncadd %s361, %s367
          %s369 = smul.addr %s365, 4
          %s370 = smul.addr %s369, 128
          %s371 = scalar_lea.hbm %s0, %s370
          %s372 = sshll.u32 %s364, 4
          %s373 = int_to_ptr.vmem [resolvable:$true] %s372
          %378 = dma.hbm_to_vmem [thread:$0]  %s371, 8192, %s373, %s361, 512, 512, 32
        $region52: #{tpu_custom_call.1} parent=47 // pred_fallthru
          _
      $region48: #{tpu_custom_call.1} parent=5 // pred_fallthru
        _
      %p379 = scmp.le.s32.totalorder 1, %s28
      %p380 = scmp.lt.s32.totalorder %s28, 5
      %p381 = pnand %p379, %p380
      %p382 = pneg %p381
      // Predicated region
      $region53: #{tpu_custom_call.1} parent=5 // pred_check
        _
      $region54: #{tpu_custom_call.1} parent=5 // pred_check_branch
        %384 = sbr.rel (%p381) target = $region56
      $region55: #{tpu_custom_call.1} parent=5 // pred_region
        %s385 = ssub.s32 %s28, 1
        %s386 = sand.u32 %s41, 1
        %s387 = scalar_lea.sflag [#allocation3], %s386
        %s388 = sand.u32 %s41, 1
        %s389 = smul.addr %s388, 512
        %s390 = scalar_lea.vmem [#allocation2], %s389
        // Predicated region
        $region57: #{tpu_custom_call.1} parent=55 // pred_check
          %p391 = pneg %p54
        $region58: #{tpu_custom_call.1} parent=55 // pred_check_branch
          %393 = sbr.rel (%p391) target = $region60
        $region59: #{tpu_custom_call.1} parent=55 // pred_region
          %394 = dma.done %s387, 8192
        $region60: #{tpu_custom_call.1} parent=55 // pred_fallthru
          _
        // Predicated region
        $region61: #{tpu_custom_call.1} parent=55 // pred_check
          %p395 = pneg %p75
        $region62: #{tpu_custom_call.1} parent=55 // pred_check_branch
          %397 = sbr.rel (%p395) target = $region64
        $region63: #{tpu_custom_call.1} parent=55 // pred_region
          %398 = dma.done [#allocation6], 8192
        $region64: #{tpu_custom_call.1} parent=55 // pred_fallthru
          _
        // Predicated region
        $region65: #{tpu_custom_call.1} parent=55 // pred_check
          %p399 = pneg %p117
        $region66: #{tpu_custom_call.1} parent=55 // pred_check_branch
          %401 = sbr.rel (%p399) target = $region68
        $region67: #{tpu_custom_call.1} parent=55 // pred_region
          %402 = dma.done [#allocation6], 2048
        $region68: #{tpu_custom_call.1} parent=55 // pred_fallthru
          _
        // Predicated region
        $region69: #{tpu_custom_call.1} parent=55 // pred_check
          %p403 = pneg %p159
        $region70: #{tpu_custom_call.1} parent=55 // pred_check_branch
          %405 = sbr.rel (%p403) target = $region72
        $region71: #{tpu_custom_call.1} parent=55 // pred_region
          %406 = dma.done [#allocation9], 2048
        $region72: #{tpu_custom_call.1} parent=55 // pred_fallthru
          _
        // Predicated region
        $region73: #{tpu_custom_call.1} parent=55 // pred_check
          %p407 = pneg %p201
        $region74: #{tpu_custom_call.1} parent=55 // pred_check_branch
          %409 = sbr.rel (%p407) target = $region76
        $region75: #{tpu_custom_call.1} parent=55 // pred_region
          %410 = dma.done [#allocation9], 8192
        $region76: #{tpu_custom_call.1} parent=55 // pred_fallthru
          _
        %s411 = sand.u32 %s41, 1
        %s412 = scalar_lea.sflag [#allocation3], %s411
        %s413 = sand.u32 %s41, 1
        %s414 = smul.addr %s413, 512
        %s415 = scalar_lea.vmem [#allocation2], %s414
        %p416 = pneg %p54
        %p417 = pneg %p51
        %p418 = pneg %p75
        %p419 = pneg %p72
        %p420 = pneg %p96
        %p421 = pneg %p93
        %p422 = pneg %p117
        %p423 = pneg %p114
        %p424 = pneg %p138
        %p425 = pneg %p135
        %p426 = pneg %p159
        %p427 = pneg %p156
        %p428 = pneg %p180
        %p429 = pneg %p177
        %p430 = pneg %p201
        %p431 = pneg %p198
        %p432 = pneg %p222
        %p433 = pneg %p219
        %p434 = pneg %p248
        %p435 = pneg %p245
        %s436 = sand.u32 %s235, 1
        %s437 = scalar_lea.sflag [#allocation4], %s436
        %s438 = sand.u32 %s235, 1
        %s439 = smul.addr %s438, 512
        %s440 = scalar_lea.vmem [#allocation11], %s439
        %p441 = pneg %p274
        %p442 = pneg %p271
        %s443 = sand.u32 %s261, 1
        %s444 = scalar_lea.sflag [#allocation13], %s443
        %s445 = sand.u32 %s261, 1
        %s446 = smul.addr %s445, 128
        %s447 = scalar_lea.vmem [#allocation12], %s446
        %s448 = smul.u32 16, %s33
        %s449 = smul.u32 16, %s33
        %s450 = smul.u32 16, %s33
        %v452 = vld [vmem:[%s390] sm:$0xff]
        %v453 = vld [vmem:[%s390 + $0x8] sm:$0xff]
        %v454 = vld [vmem:[%s390 + $0x10] sm:$0xff]
        %v455 = vld [vmem:[%s390 + $0x18] sm:$0xff]
        %v456 = vld [vmem:[%s390 + $0x20] sm:$0xff]
        %v457 = vld [vmem:[%s390 + $0x28] sm:$0xff]
        %v458 = vld [vmem:[%s390 + $0x30] sm:$0xff]
        %v459 = vld [vmem:[%s390 + $0x38] sm:$0xff]
        %v460 = vld [vmem:[%s390 + $0x40] sm:$0xff]
        %v461 = vld [vmem:[%s390 + $0x48] sm:$0xff]
        %v462 = vld [vmem:[%s390 + $0x50] sm:$0xff]
        %v463 = vld [vmem:[%s390 + $0x58] sm:$0xff]
        %v464 = vld [vmem:[%s390 + $0x60] sm:$0xff]
        %v465 = vld [vmem:[%s390 + $0x68] sm:$0xff]
        %v466 = vld [vmem:[%s390 + $0x70] sm:$0xff]
        %v467 = vld [vmem:[%s390 + $0x78] sm:$0xff]
        %v468 = vld [vmem:[%s390 + $0x80] sm:$0xff]
        %v469 = vld [vmem:[%s390 + $0x88] sm:$0xff]
        %v470 = vld [vmem:[%s390 + $0x90] sm:$0xff]
        %v471 = vld [vmem:[%s390 + $0x98] sm:$0xff]
        %v472 = vld [vmem:[%s390 + $0xa0] sm:$0xff]
        %v473 = vld [vmem:[%s390 + $0xa8] sm:$0xff]
        %v474 = vld [vmem:[%s390 + $0xb0] sm:$0xff]
        %v475 = vld [vmem:[%s390 + $0xb8] sm:$0xff]
        %v476 = vld [vmem:[%s390 + $0xc0] sm:$0xff]
        %v477 = vld [vmem:[%s390 + $0xc8] sm:$0xff]
        %v478 = vld [vmem:[%s390 + $0xd0] sm:$0xff]
        %v479 = vld [vmem:[%s390 + $0xd8] sm:$0xff]
        %v480 = vld [vmem:[%s390 + $0xe0] sm:$0xff]
        %v481 = vld [vmem:[%s390 + $0xe8] sm:$0xff]
        %v482 = vld [vmem:[%s390 + $0xf0] sm:$0xff]
        %v483 = vld [vmem:[%s390 + $0xf8] sm:$0xff]
        %v484 = vld [vmem:[%s390 + $0x100] sm:$0xff]
        %v485 = vld [vmem:[%s390 + $0x108] sm:$0xff]
        %v486 = vld [vmem:[%s390 + $0x110] sm:$0xff]
        %v487 = vld [vmem:[%s390 + $0x118] sm:$0xff]
        %v488 = vld [vmem:[%s390 + $0x120] sm:$0xff]
        %v489 = vld [vmem:[%s390 + $0x128] sm:$0xff]
        %v490 = vld [vmem:[%s390 + $0x130] sm:$0xff]
        %v491 = vld [vmem:[%s390 + $0x138] sm:$0xff]
        %v492 = vld [vmem:[%s390 + $0x140] sm:$0xff]
        %v493 = vld [vmem:[%s390 + $0x148] sm:$0xff]
        %v494 = vld [vmem:[%s390 + $0x150] sm:$0xff]
        %v495 = vld [vmem:[%s390 + $0x158] sm:$0xff]
        %v496 = vld [vmem:[%s390 + $0x160] sm:$0xff]
        %v497 = vld [vmem:[%s390 + $0x168] sm:$0xff]
        %v498 = vld [vmem:[%s390 + $0x170] sm:$0xff]
        %v499 = vld [vmem:[%s390 + $0x178] sm:$0xff]
        %v500 = vld [vmem:[%s390 + $0x180] sm:$0xff]
        %v501 = vld [vmem:[%s390 + $0x188] sm:$0xff]
        %v502 = vld [vmem:[%s390 + $0x190] sm:$0xff]
        %v503 = vld [vmem:[%s390 + $0x198] sm:$0xff]
        %v504 = vld [vmem:[%s390 + $0x1a0] sm:$0xff]
        %v505 = vld [vmem:[%s390 + $0x1a8] sm:$0xff]
        %v506 = vld [vmem:[%s390 + $0x1b0] sm:$0xff]
        %v507 = vld [vmem:[%s390 + $0x1b8] sm:$0xff]
        %v508 = vld [vmem:[%s390 + $0x1c0] sm:$0xff]
        %v509 = vld [vmem:[%s390 + $0x1c8] sm:$0xff]
        %v510 = vld [vmem:[%s390 + $0x1d0] sm:$0xff]
        %v511 = vld [vmem:[%s390 + $0x1d8] sm:$0xff]
        %v512 = vld [vmem:[%s390 + $0x1e0] sm:$0xff]
        %v513 = vld [vmem:[%s390 + $0x1e8] sm:$0xff]
        %v514 = vld [vmem:[%s390 + $0x1f0] sm:$0xff]
        %v515 = vld [vmem:[%s390 + $0x1f8] sm:$0xff]
        %v516 = vmul.f32 %v452, %v452
        %v517 = vmul.f32 %v453, %v453
        %v518 = vmul.f32 %v454, %v454
        %v519 = vmul.f32 %v455, %v455
        %v520 = vmul.f32 %v456, %v456
        %v521 = vmul.f32 %v457, %v457
        %v522 = vmul.f32 %v458, %v458
        %v523 = vmul.f32 %v459, %v459
        %v524 = vmul.f32 %v460, %v460
        %v525 = vmul.f32 %v461, %v461
        %v526 = vmul.f32 %v462, %v462
        %v527 = vmul.f32 %v463, %v463
        %v528 = vmul.f32 %v464, %v464
        %v529 = vmul.f32 %v465, %v465
        %v530 = vmul.f32 %v466, %v466
        %v531 = vmul.f32 %v467, %v467
        %v532 = vmul.f32 %v468, %v468
        %v533 = vmul.f32 %v469, %v469
        %v534 = vmul.f32 %v470, %v470
        %v535 = vmul.f32 %v471, %v471
        %v536 = vmul.f32 %v472, %v472
        %v537 = vmul.f32 %v473, %v473
        %v538 = vmul.f32 %v474, %v474
        %v539 = vmul.f32 %v475, %v475
        %v540 = vmul.f32 %v476, %v476
        %v541 = vmul.f32 %v477, %v477
        %v542 = vmul.f32 %v478, %v478
        %v543 = vmul.f32 %v479, %v479
        %v544 = vmul.f32 %v480, %v480
        %v545 = vmul.f32 %v481, %v481
        %v546 = vmul.f32 %v482, %v482
        %v547 = vmul.f32 %v483, %v483
        %v548 = vmul.f32 %v484, %v484
        %v549 = vmul.f32 %v485, %v485
        %v550 = vmul.f32 %v486, %v486
        %v551 = vmul.f32 %v487, %v487
        %v552 = vmul.f32 %v488, %v488
        %v553 = vmul.f32 %v489, %v489
        %v554 = vmul.f32 %v490, %v490
        %v555 = vmul.f32 %v491, %v491
        %v556 = vmul.f32 %v492, %v492
        %v557 = vmul.f32 %v493, %v493
        %v558 = vmul.f32 %v494, %v494
        %v559 = vmul.f32 %v495, %v495
        %v560 = vmul.f32 %v496, %v496
        %v561 = vmul.f32 %v497, %v497
        %v562 = vmul.f32 %v498, %v498
        %v563 = vmul.f32 %v499, %v499
        %v564 = vmul.f32 %v500, %v500
        %v565 = vmul.f32 %v501, %v501
        %v566 = vmul.f32 %v502, %v502
        %v567 = vmul.f32 %v503, %v503
        %v568 = vmul.f32 %v504, %v504
        %v569 = vmul.f32 %v505, %v505
        %v570 = vmul.f32 %v506, %v506
        %v571 = vmul.f32 %v507, %v507
        %v572 = vmul.f32 %v508, %v508
        %v573 = vmul.f32 %v509, %v509
        %v574 = vmul.f32 %v510, %v510
        %v575 = vmul.f32 %v511, %v511
        %v576 = vmul.f32 %v512, %v512
        %v577 = vmul.f32 %v513, %v513
        %v578 = vmul.f32 %v514, %v514
        %v579 = vmul.f32 %v515, %v515
        %v580 = vadd.f32 %v516, %v517
        %v581 = vadd.f32 %v580, %v518
        %v582 = vadd.f32 %v581, %v519
        %583 = vadd.xlane.f32.xlu0 %v582
        %v584 = vpop.xlane.xlu0 %583
        %v585 = vadd.f32 %v520, %v521
        %v586 = vadd.f32 %v585, %v522
        %v587 = vadd.f32 %v586, %v523
        %588 = vadd.xlane.f32.xlu0 %v587
        %v589 = vpop.xlane.xlu0 %588
        %v590 = vadd.f32 %v524, %v525
        %v591 = vadd.f32 %v590, %v526
        %v592 = vadd.f32 %v591, %v527
        %593 = vadd.xlane.f32.xlu0 %v592
        %v594 = vpop.xlane.xlu0 %593
        %v595 = vadd.f32 %v528, %v529
        %v596 = vadd.f32 %v595, %v530
        %v597 = vadd.f32 %v596, %v531
        %598 = vadd.xlane.f32.xlu0 %v597
        %v599 = vpop.xlane.xlu0 %598
        %v600 = vadd.f32 %v532, %v533
        %v601 = vadd.f32 %v600, %v534
        %v602 = vadd.f32 %v601, %v535
        %603 = vadd.xlane.f32.xlu0 %v602
        %v604 = vpop.xlane.xlu0 %603
        %v605 = vadd.f32 %v536, %v537
        %v606 = vadd.f32 %v605, %v538
        %v607 = vadd.f32 %v606, %v539
        %608 = vadd.xlane.f32.xlu0 %v607
        %v609 = vpop.xlane.xlu0 %608
        %v610 = vadd.f32 %v540, %v541
        %v611 = vadd.f32 %v610, %v542
        %v612 = vadd.f32 %v611, %v543
        %613 = vadd.xlane.f32.xlu0 %v612
        %v614 = vpop.xlane.xlu0 %613
        %v615 = vadd.f32 %v544, %v545
        %v616 = vadd.f32 %v615, %v546
        %v617 = vadd.f32 %v616, %v547
        %618 = vadd.xlane.f32.xlu0 %v617
        %v619 = vpop.xlane.xlu0 %618
        %v620 = vadd.f32 %v548, %v549
        %v621 = vadd.f32 %v620, %v550
        %v622 = vadd.f32 %v621, %v551
        %623 = vadd.xlane.f32.xlu0 %v622
        %v624 = vpop.xlane.xlu0 %623
        %v625 = vadd.f32 %v552, %v553
        %v626 = vadd.f32 %v625, %v554
        %v627 = vadd.f32 %v626, %v555
        %628 = vadd.xlane.f32.xlu0 %v627
        %v629 = vpop.xlane.xlu0 %628
        %v630 = vadd.f32 %v556, %v557
        %v631 = vadd.f32 %v630, %v558
        %v632 = vadd.f32 %v631, %v559
        %633 = vadd.xlane.f32.xlu0 %v632
        %v634 = vpop.xlane.xlu0 %633
        %v635 = vadd.f32 %v560, %v561
        %v636 = vadd.f32 %v635, %v562
        %v637 = vadd.f32 %v636, %v563
        %638 = vadd.xlane.f32.xlu0 %v637
        %v639 = vpop.xlane.xlu0 %638
        %v640 = vadd.f32 %v564, %v565
        %v641 = vadd.f32 %v640, %v566
        %v642 = vadd.f32 %v641, %v567
        %643 = vadd.xlane.f32.xlu0 %v642
        %v644 = vpop.xlane.xlu0 %643
        %v645 = vadd.f32 %v568, %v569
        %v646 = vadd.f32 %v645, %v570
        %v647 = vadd.f32 %v646, %v571
        %648 = vadd.xlane.f32.xlu0 %v647
        %v649 = vpop.xlane.xlu0 %648
        %v650 = vadd.f32 %v572, %v573
        %v651 = vadd.f32 %v650, %v574
        %v652 = vadd.f32 %v651, %v575
        %653 = vadd.xlane.f32.xlu0 %v652
        %v654 = vpop.xlane.xlu0 %653
        %v655 = vadd.f32 %v576, %v577
        %v656 = vadd.f32 %v655, %v578
        %v657 = vadd.f32 %v656, %v579
        %658 = vadd.xlane.f32.xlu0 %v657
        %v659 = vpop.xlane.xlu0 %658
        %v660 = vmax.f32 %v584, 1e-24
        %v661 = vmax.f32 %v589, 1e-24
        %v662 = vmax.f32 %v594, 1e-24
        %v663 = vmax.f32 %v599, 1e-24
        %v664 = vmax.f32 %v604, 1e-24
        %v665 = vmax.f32 %v609, 1e-24
        %v666 = vmax.f32 %v614, 1e-24
        %v667 = vmax.f32 %v619, 1e-24
        %v668 = vmax.f32 %v624, 1e-24
        %v669 = vmax.f32 %v629, 1e-24
        %v670 = vmax.f32 %v634, 1e-24
        %v671 = vmax.f32 %v639, 1e-24
        %v672 = vmax.f32 %v644, 1e-24
        %v673 = vmax.f32 %v649, 1e-24
        %v674 = vmax.f32 %v654, 1e-24
        %v675 = vmax.f32 %v659, 1e-24
        %v676 = vrsqrt.pop %v660
        %v677 = vrsqrt.pop %v661
        %v678 = vrsqrt.pop %v662
        %v679 = vrsqrt.pop %v663
        %v680 = vrsqrt.pop %v664
        %v681 = vrsqrt.pop %v665
        %v682 = vrsqrt.pop %v666
        %v683 = vrsqrt.pop %v667
        %v684 = vrsqrt.pop %v668
        %v685 = vrsqrt.pop %v669
        %v686 = vrsqrt.pop %v670
        %v687 = vrsqrt.pop %v671
        %v688 = vrsqrt.pop %v672
        %v689 = vrsqrt.pop %v673
        %v690 = vrsqrt.pop %v674
        %v691 = vrsqrt.pop %v675
        %v692 = vmul.f32 %v452, %v676
        %v693 = vmul.f32 %v453, %v676
        %v694 = vmul.f32 %v454, %v676
        %v695 = vmul.f32 %v455, %v676
        %v696 = vmul.f32 %v456, %v677
        %v697 = vmul.f32 %v457, %v677
        %v698 = vmul.f32 %v458, %v677
        %v699 = vmul.f32 %v459, %v677
        %v700 = vmul.f32 %v460, %v678
        %v701 = vmul.f32 %v461, %v678
        %v702 = vmul.f32 %v462, %v678
        %v703 = vmul.f32 %v463, %v678
        %v704 = vmul.f32 %v464, %v679
        %v705 = vmul.f32 %v465, %v679
        %v706 = vmul.f32 %v466, %v679
        %v707 = vmul.f32 %v467, %v679
        %v708 = vmul.f32 %v468, %v680
        %v709 = vmul.f32 %v469, %v680
        %v710 = vmul.f32 %v470, %v680
        %v711 = vmul.f32 %v471, %v680
        %v712 = vmul.f32 %v472, %v681
        %v713 = vmul.f32 %v473, %v681
        %v714 = vmul.f32 %v474, %v681
        %v715 = vmul.f32 %v475, %v681
        %v716 = vmul.f32 %v476, %v682
        %v717 = vmul.f32 %v477, %v682
        %v718 = vmul.f32 %v478, %v682
        %v719 = vmul.f32 %v479, %v682
        %v720 = vmul.f32 %v480, %v683
        %v721 = vmul.f32 %v481, %v683
        %v722 = vmul.f32 %v482, %v683
        %v723 = vmul.f32 %v483, %v683
        %v724 = vmul.f32 %v484, %v684
        %v725 = vmul.f32 %v485, %v684
        %v726 = vmul.f32 %v486, %v684
        %v727 = vmul.f32 %v487, %v684
        %v728 = vmul.f32 %v488, %v685
        %v729 = vmul.f32 %v489, %v685
        %v730 = vmul.f32 %v490, %v685
        %v731 = vmul.f32 %v491, %v685
        %v732 = vmul.f32 %v492, %v686
        %v733 = vmul.f32 %v493, %v686
        %v734 = vmul.f32 %v494, %v686
        %v735 = vmul.f32 %v495, %v686
        %v736 = vmul.f32 %v496, %v687
        %v737 = vmul.f32 %v497, %v687
        %v738 = vmul.f32 %v498, %v687
        %v739 = vmul.f32 %v499, %v687
        %v740 = vmul.f32 %v500, %v688
        %v741 = vmul.f32 %v501, %v688
        %v742 = vmul.f32 %v502, %v688
        %v743 = vmul.f32 %v503, %v688
        %v744 = vmul.f32 %v504, %v689
        %v745 = vmul.f32 %v505, %v689
        %v746 = vmul.f32 %v506, %v689
        %v747 = vmul.f32 %v507, %v689
        %v748 = vmul.f32 %v508, %v690
        %v749 = vmul.f32 %v509, %v690
        %v750 = vmul.f32 %v510, %v690
        %v751 = vmul.f32 %v511, %v690
        %v752 = vmul.f32 %v512, %v691
        %v753 = vmul.f32 %v513, %v691
        %v754 = vmul.f32 %v514, %v691
        %v755 = vmul.f32 %v515, %v691
        %v756 = vpack.c.bf16 %v696, %v692
        %v757 = vpack.c.bf16 %v697, %v693
        %v758 = vpack.c.bf16 %v698, %v694
        %v759 = vpack.c.bf16 %v699, %v695
        %v760 = vpack.c.bf16 %v704, %v700
        %v761 = vpack.c.bf16 %v705, %v701
        %v762 = vpack.c.bf16 %v706, %v702
        %v763 = vpack.c.bf16 %v707, %v703
        %v764 = vpack.c.bf16 %v712, %v708
        %v765 = vpack.c.bf16 %v713, %v709
        %v766 = vpack.c.bf16 %v714, %v710
        %v767 = vpack.c.bf16 %v715, %v711
        %v768 = vpack.c.bf16 %v720, %v716
        %v769 = vpack.c.bf16 %v721, %v717
        %v770 = vpack.c.bf16 %v722, %v718
        %v771 = vpack.c.bf16 %v723, %v719
        %v772 = vpack.c.bf16 %v728, %v724
        %v773 = vpack.c.bf16 %v729, %v725
        %v774 = vpack.c.bf16 %v730, %v726
        %v775 = vpack.c.bf16 %v731, %v727
        %v776 = vpack.c.bf16 %v736, %v732
        %v777 = vpack.c.bf16 %v737, %v733
        %v778 = vpack.c.bf16 %v738, %v734
        %v779 = vpack.c.bf16 %v739, %v735
        %v780 = vpack.c.bf16 %v744, %v740
        %v781 = vpack.c.bf16 %v745, %v741
        %v782 = vpack.c.bf16 %v746, %v742
        %v783 = vpack.c.bf16 %v747, %v743
        %v784 = vpack.c.bf16 %v752, %v748
        %v785 = vpack.c.bf16 %v753, %v749
        %v786 = vpack.c.bf16 %v754, %v750
        %v787 = vpack.c.bf16 %v755, %v751
        %v788 = vld [vmem:[#allocation5] sm:$0xff]
        %v789 = vld [vmem:[#allocation5 + $0x8] sm:$0xff]
        %v790 = vld [vmem:[#allocation5 + $0x10] sm:$0xff]
        %v791 = vld [vmem:[#allocation5 + $0x18] sm:$0xff]
        %v792 = vld [vmem:[#allocation5 + $0x20] sm:$0xff]
        %v793 = vld [vmem:[#allocation5 + $0x28] sm:$0xff]
        %v794 = vld [vmem:[#allocation5 + $0x30] sm:$0xff]
        %v795 = vld [vmem:[#allocation5 + $0x38] sm:$0xff]
        %v796 = vld [vmem:[#allocation5 + $0x40] sm:$0xff]
        %v797 = vld [vmem:[#allocation5 + $0x48] sm:$0xff]
        %v798 = vld [vmem:[#allocation5 + $0x50] sm:$0xff]
        %v799 = vld [vmem:[#allocation5 + $0x58] sm:$0xff]
        %v800 = vld [vmem:[#allocation5 + $0x60] sm:$0xff]
        %v801 = vld [vmem:[#allocation5 + $0x68] sm:$0xff]
        %v802 = vld [vmem:[#allocation5 + $0x70] sm:$0xff]
        %v803 = vld [vmem:[#allocation5 + $0x78] sm:$0xff]
        %v804 = vld [vmem:[#allocation5 + $0x80] sm:$0xff]
        %v805 = vld [vmem:[#allocation5 + $0x88] sm:$0xff]
        %v806 = vld [vmem:[#allocation5 + $0x90] sm:$0xff]
        %v807 = vld [vmem:[#allocation5 + $0x98] sm:$0xff]
        %v808 = vld [vmem:[#allocation5 + $0xa0] sm:$0xff]
        %v809 = vld [vmem:[#allocation5 + $0xa8] sm:$0xff]
        %v810 = vld [vmem:[#allocation5 + $0xb0] sm:$0xff]
        %v811 = vld [vmem:[#allocation5 + $0xb8] sm:$0xff]
        %v812 = vld [vmem:[#allocation5 + $0xc0] sm:$0xff]
        %v813 = vld [vmem:[#allocation5 + $0xc8] sm:$0xff]
        %v814 = vld [vmem:[#allocation5 + $0xd0] sm:$0xff]
        %v815 = vld [vmem:[#allocation5 + $0xd8] sm:$0xff]
        %v816 = vld [vmem:[#allocation5 + $0xe0] sm:$0xff]
        %v817 = vld [vmem:[#allocation5 + $0xe8] sm:$0xff]
        %v818 = vld [vmem:[#allocation5 + $0xf0] sm:$0xff]
        %v819 = vld [vmem:[#allocation5 + $0xf8] sm:$0xff]
        %v820 = vld [vmem:[#allocation5 + $0x100] sm:$0xff]
        %v821 = vld [vmem:[#allocation5 + $0x108] sm:$0xff]
        %v822 = vld [vmem:[#allocation5 + $0x110] sm:$0xff]
        %v823 = vld [vmem:[#allocation5 + $0x118] sm:$0xff]
        %v824 = vld [vmem:[#allocation5 + $0x120] sm:$0xff]
        %v825 = vld [vmem:[#allocation5 + $0x128] sm:$0xff]
        %v826 = vld [vmem:[#allocation5 + $0x130] sm:$0xff]
        %v827 = vld [vmem:[#allocation5 + $0x138] sm:$0xff]
        %v828 = vld [vmem:[#allocation5 + $0x140] sm:$0xff]
        %v829 = vld [vmem:[#allocation5 + $0x148] sm:$0xff]
        %v830 = vld [vmem:[#allocation5 + $0x150] sm:$0xff]
        %v831 = vld [vmem:[#allocation5 + $0x158] sm:$0xff]
        %v832 = vld [vmem:[#allocation5 + $0x160] sm:$0xff]
        %v833 = vld [vmem:[#allocation5 + $0x168] sm:$0xff]
        %v834 = vld [vmem:[#allocation5 + $0x170] sm:$0xff]
        %v835 = vld [vmem:[#allocation5 + $0x178] sm:$0xff]
        %v836 = vld [vmem:[#allocation5 + $0x180] sm:$0xff]
        %v837 = vld [vmem:[#allocation5 + $0x188] sm:$0xff]
        %v838 = vld [vmem:[#allocation5 + $0x190] sm:$0xff]
        %v839 = vld [vmem:[#allocation5 + $0x198] sm:$0xff]
        %v840 = vld [vmem:[#allocation5 + $0x1a0] sm:$0xff]
        %v841 = vld [vmem:[#allocation5 + $0x1a8] sm:$0xff]
        %v842 = vld [vmem:[#allocation5 + $0x1b0] sm:$0xff]
        %v843 = vld [vmem:[#allocation5 + $0x1b8] sm:$0xff]
        %v844 = vld [vmem:[#allocation5 + $0x1c0] sm:$0xff]
        %v845 = vld [vmem:[#allocation5 + $0x1c8] sm:$0xff]
        %v846 = vld [vmem:[#allocation5 + $0x1d0] sm:$0xff]
        %v847 = vld [vmem:[#allocation5 + $0x1d8] sm:$0xff]
        %v848 = vld [vmem:[#allocation5 + $0x1e0] sm:$0xff]
        %v849 = vld [vmem:[#allocation5 + $0x1e8] sm:$0xff]
        %v850 = vld [vmem:[#allocation5 + $0x1f0] sm:$0xff]
        %v851 = vld [vmem:[#allocation5 + $0x1f8] sm:$0xff]
        %v852 = vld [vmem:[%s2] sm:$0x3]
        %v854 = vlaneseq
        %v855 = vshrl.u32 %v854, 7
        %v856 = vsub.s32 0, %v855
        %v857 = vrot.slane %v852, %v856
        %v858 = vlaneseq
        %v859 = vshrl.u32 %v858, 7
        %v860 = vsub.s32 1, %v859
        %v861 = vrot.slane %v852, %v860
        %v928 = vunpack.c.l.b16 %v788
        %v929 = vunpack.c.h.b16 %v788
        %v930 = vunpack.c.l.b16 %v789
        %v931 = vunpack.c.h.b16 %v789
        %v932 = vunpack.c.l.b16 %v790
        %v933 = vunpack.c.h.b16 %v790
        %v934 = vunpack.c.l.b16 %v791
        %v935 = vunpack.c.h.b16 %v791
        %v936 = vunpack.c.l.b16 %v792
        %v937 = vunpack.c.h.b16 %v792
        %v938 = vunpack.c.l.b16 %v793
        %v939 = vunpack.c.h.b16 %v793
        %v940 = vunpack.c.l.b16 %v794
        %v941 = vunpack.c.h.b16 %v794
        %v942 = vunpack.c.l.b16 %v795
        %v943 = vunpack.c.h.b16 %v795
        %v944 = vunpack.c.l.b16 %v796
        %v945 = vunpack.c.h.b16 %v796
        %v946 = vunpack.c.l.b16 %v797
        %v947 = vunpack.c.h.b16 %v797
        %v948 = vunpack.c.l.b16 %v798
        %v949 = vunpack.c.h.b16 %v798
        %v950 = vunpack.c.l.b16 %v799
        %v951 = vunpack.c.h.b16 %v799
        %v952 = vunpack.c.l.b16 %v800
        %v953 = vunpack.c.h.b16 %v800
        %v954 = vunpack.c.l.b16 %v801
        %v955 = vunpack.c.h.b16 %v801
        %v956 = vunpack.c.l.b16 %v802
        %v957 = vunpack.c.h.b16 %v802
        %v958 = vunpack.c.l.b16 %v803
        %v959 = vunpack.c.h.b16 %v803
        %v960 = vunpack.c.l.b16 %v804
        %v961 = vunpack.c.h.b16 %v804
        %v962 = vunpack.c.l.b16 %v805
        %v963 = vunpack.c.h.b16 %v805
        %v964 = vunpack.c.l.b16 %v806
        %v965 = vunpack.c.h.b16 %v806
        %v966 = vunpack.c.l.b16 %v807
        %v967 = vunpack.c.h.b16 %v807
        %v968 = vunpack.c.l.b16 %v808
        %v969 = vunpack.c.h.b16 %v808
        %v970 = vunpack.c.l.b16 %v809
        %v971 = vunpack.c.h.b16 %v809
        %v972 = vunpack.c.l.b16 %v810
        %v973 = vunpack.c.h.b16 %v810
        %v974 = vunpack.c.l.b16 %v811
        %v975 = vunpack.c.h.b16 %v811
        %v976 = vunpack.c.l.b16 %v812
        %v977 = vunpack.c.h.b16 %v812
        %v978 = vunpack.c.l.b16 %v813
        %v979 = vunpack.c.h.b16 %v813
        %v980 = vunpack.c.l.b16 %v814
        %v981 = vunpack.c.h.b16 %v814
        %v982 = vunpack.c.l.b16 %v815
        %v983 = vunpack.c.h.b16 %v815
        %v984 = vunpack.c.l.b16 %v816
        %v985 = vunpack.c.h.b16 %v816
        %v986 = vunpack.c.l.b16 %v817
        %v987 = vunpack.c.h.b16 %v817
        %v988 = vunpack.c.l.b16 %v818
        %v989 = vunpack.c.h.b16 %v818
        %v990 = vunpack.c.l.b16 %v819
        %v991 = vunpack.c.h.b16 %v819
        %v992 = vunpack.c.l.b16 %v820
        %v993 = vunpack.c.h.b16 %v820
        %v994 = vunpack.c.l.b16 %v821
        %v995 = vunpack.c.h.b16 %v821
        %v996 = vunpack.c.l.b16 %v822
        %v997 = vunpack.c.h.b16 %v822
        %v998 = vunpack.c.l.b16 %v823
        %v999 = vunpack.c.h.b16 %v823
        %v1000 = vunpack.c.l.b16 %v824
        %v1001 = vunpack.c.h.b16 %v824
        %v1002 = vunpack.c.l.b16 %v825
        %v1003 = vunpack.c.h.b16 %v825
        %v1004 = vunpack.c.l.b16 %v826
        %v1005 = vunpack.c.h.b16 %v826
        %v1006 = vunpack.c.l.b16 %v827
        %v1007 = vunpack.c.h.b16 %v827
        %v1008 = vunpack.c.l.b16 %v828
        %v1009 = vunpack.c.h.b16 %v828
        %v1010 = vunpack.c.l.b16 %v829
        %v1011 = vunpack.c.h.b16 %v829
        %v1012 = vunpack.c.l.b16 %v830
        %v1013 = vunpack.c.h.b16 %v830
        %v1014 = vunpack.c.l.b16 %v831
        %v1015 = vunpack.c.h.b16 %v831
        %v1016 = vunpack.c.l.b16 %v832
        %v1017 = vunpack.c.h.b16 %v832
        %v1018 = vunpack.c.l.b16 %v833
        %v1019 = vunpack.c.h.b16 %v833
        %v1020 = vunpack.c.l.b16 %v834
        %v1021 = vunpack.c.h.b16 %v834
        %v1022 = vunpack.c.l.b16 %v835
        %v1023 = vunpack.c.h.b16 %v835
        %v1024 = vunpack.c.l.b16 %v836
        %v1025 = vunpack.c.h.b16 %v836
        %v1026 = vunpack.c.l.b16 %v837
        %v1027 = vunpack.c.h.b16 %v837
        %v1028 = vunpack.c.l.b16 %v838
        %v1029 = vunpack.c.h.b16 %v838
        %v1030 = vunpack.c.l.b16 %v839
        %v1031 = vunpack.c.h.b16 %v839
        %v1032 = vunpack.c.l.b16 %v840
        %v1033 = vunpack.c.h.b16 %v840
        %v1034 = vunpack.c.l.b16 %v841
        %v1035 = vunpack.c.h.b16 %v841
        %v1036 = vunpack.c.l.b16 %v842
        %v1037 = vunpack.c.h.b16 %v842
        %v1038 = vunpack.c.l.b16 %v843
        %v1039 = vunpack.c.h.b16 %v843
        %v1040 = vunpack.c.l.b16 %v844
        %v1041 = vunpack.c.h.b16 %v844
        %v1042 = vunpack.c.l.b16 %v845
        %v1043 = vunpack.c.h.b16 %v845
        %v1044 = vunpack.c.l.b16 %v846
        %v1045 = vunpack.c.h.b16 %v846
        %v1046 = vunpack.c.l.b16 %v847
        %v1047 = vunpack.c.h.b16 %v847
        %v1048 = vunpack.c.l.b16 %v848
        %v1049 = vunpack.c.h.b16 %v848
        %v1050 = vunpack.c.l.b16 %v849
        %v1051 = vunpack.c.h.b16 %v849
        %v1052 = vunpack.c.l.b16 %v850
        %v1053 = vunpack.c.h.b16 %v850
        %v1054 = vunpack.c.l.b16 %v851
        %v1055 = vunpack.c.h.b16 %v851
        %v1056 = vpack.c.b16 %v930, %v928
        %v1057 = vpack.c.b16 %v931, %v929
        %v1058 = vpack.c.b16 %v934, %v932
        %v1059 = vpack.c.b16 %v935, %v933
        %v1060 = vpack.c.b16 %v938, %v936
        %v1061 = vpack.c.b16 %v939, %v937
        %v1062 = vpack.c.b16 %v942, %v940
        %v1063 = vpack.c.b16 %v943, %v941
        %v1064 = vpack.c.b16 %v946, %v944
        %v1065 = vpack.c.b16 %v947, %v945
        %v1066 = vpack.c.b16 %v950, %v948
        %v1067 = vpack.c.b16 %v951, %v949
        %v1068 = vpack.c.b16 %v954, %v952
        %v1069 = vpack.c.b16 %v955, %v953
        %v1070 = vpack.c.b16 %v958, %v956
        %v1071 = vpack.c.b16 %v959, %v957
        %v1072 = vpack.c.b16 %v962, %v960
        %v1073 = vpack.c.b16 %v963, %v961
        %v1074 = vpack.c.b16 %v966, %v964
        %v1075 = vpack.c.b16 %v967, %v965
        %v1076 = vpack.c.b16 %v970, %v968
        %v1077 = vpack.c.b16 %v971, %v969
        %v1078 = vpack.c.b16 %v974, %v972
        %v1079 = vpack.c.b16 %v975, %v973
        %v1080 = vpack.c.b16 %v978, %v976
        %v1081 = vpack.c.b16 %v979, %v977
        %v1082 = vpack.c.b16 %v982, %v980
        %v1083 = vpack.c.b16 %v983, %v981
        %v1084 = vpack.c.b16 %v986, %v984
        %v1085 = vpack.c.b16 %v987, %v985
        %v1086 = vpack.c.b16 %v990, %v988
        %v1087 = vpack.c.b16 %v991, %v989
        %v1088 = vpack.c.b16 %v994, %v992
        %v1089 = vpack.c.b16 %v995, %v993
        %v1090 = vpack.c.b16 %v998, %v996
        %v1091 = vpack.c.b16 %v999, %v997
        %v1092 = vpack.c.b16 %v1002, %v1000
        %v1093 = vpack.c.b16 %v1003, %v1001
        %v1094 = vpack.c.b16 %v1006, %v1004
        %v1095 = vpack.c.b16 %v1007, %v1005
        %v1096 = vpack.c.b16 %v1010, %v1008
        %v1097 = vpack.c.b16 %v1011, %v1009
        %v1098 = vpack.c.b16 %v1014, %v1012
        %v1099 = vpack.c.b16 %v1015, %v1013
        %v1100 = vpack.c.b16 %v1018, %v1016
        %v1101 = vpack.c.b16 %v1019, %v1017
        %v1102 = vpack.c.b16 %v1022, %v1020
        %v1103 = vpack.c.b16 %v1023, %v1021
        %v1104 = vpack.c.b16 %v1026, %v1024
        %v1105 = vpack.c.b16 %v1027, %v1025
        %v1106 = vpack.c.b16 %v1030, %v1028
        %v1107 = vpack.c.b16 %v1031, %v1029
        %v1108 = vpack.c.b16 %v1034, %v1032
        %v1109 = vpack.c.b16 %v1035, %v1033
        %v1110 = vpack.c.b16 %v1038, %v1036
        %v1111 = vpack.c.b16 %v1039, %v1037
        %v1112 = vpack.c.b16 %v1042, %v1040
        %v1113 = vpack.c.b16 %v1043, %v1041
        %v1114 = vpack.c.b16 %v1046, %v1044
        %v1115 = vpack.c.b16 %v1047, %v1045
        %v1116 = vpack.c.b16 %v1050, %v1048
        %v1117 = vpack.c.b16 %v1051, %v1049
        %v1118 = vpack.c.b16 %v1054, %v1052
        %v1119 = vpack.c.b16 %v1055, %v1053
        %1184 = vmatprep.subr.bf16.mxu0 %v1057
        %1185 = vmatpush1.bf16.msra.mxu0 %v1056
        %1186 = vmatprep.subr.bf16.mxu0 %v1059
        %1187 = vmatpush1.bf16.msra.mxu0 %v1058
        %1188 = vmatprep.subr.bf16.mxu0 %v1061
        %1189 = vmatpush1.bf16.msra.mxu0 %v1060
        %1190 = vmatprep.subr.bf16.mxu0 %v1063
        %1191 = vmatpush1.bf16.msra.mxu0 %v1062
        %1192 = vmatprep.subr.bf16.mxu0 %v1065
        %1193 = vmatpush1.bf16.msra.mxu0 %v1064
        %1194 = vmatprep.subr.bf16.mxu0 %v1067
        %1195 = vmatpush1.bf16.msra.mxu0 %v1066
        %1196 = vmatprep.subr.bf16.mxu0 %v1069
        %1197 = vmatpush1.bf16.msra.mxu0 %v1068
        %1198 = vmatprep.subr.bf16.mxu0 %v1071
        %1199 = vmatpush1.bf16.msra.mxu0 %v1070
        %1200 = vmatprep.subr.bf16.mxu0 %v1073
        %1201 = vmatpush1.bf16.msra.mxu0 %v1072
        %1202 = vmatprep.subr.bf16.mxu0 %v1075
        %1203 = vmatpush1.bf16.msra.mxu0 %v1074
        %1204 = vmatprep.subr.bf16.mxu0 %v1077
        %1205 = vmatpush1.bf16.msra.mxu0 %v1076
        %1206 = vmatprep.subr.bf16.mxu0 %v1079
        %1207 = vmatpush1.bf16.msra.mxu0 %v1078
        %1208 = vmatprep.subr.bf16.mxu0 %v1081
        %1209 = vmatpush1.bf16.msra.mxu0 %v1080
        %1210 = vmatprep.subr.bf16.mxu0 %v1083
        %1211 = vmatpush1.bf16.msra.mxu0 %v1082
        %1212 = vmatprep.subr.bf16.mxu0 %v1085
        %1213 = vmatpush1.bf16.msra.mxu0 %v1084
        %1214 = vmatprep.subr.bf16.mxu0 %v1087
        %1215 = vmatpush1.bf16.msra.mxu0 %v1086
        %1216 = vmatprep.mubr.bf16.mxu0 %v757
        %1217 = vmatmul.mubr.bf16.gmra.mrb[0].mxu0 %v756
        %v1218 = vpop.f32.mrb[0].mxu0
        %v1219 = vadd.f32 %v857, %v1218
        %v1220 = vpop.f32.mrb[0].mxu0
        %v1221 = vadd.f32 %v861, %v1220
        %v1222 = vpop.f32.mrb[0].mxu0
        %v1223 = vadd.f32 %v857, %v1222
        %v1224 = vpop.f32.mrb[0].mxu0
        %v1225 = vadd.f32 %v861, %v1224
        %1226 = vmatprep.mubr.bf16.mxu0 %v761
        %1227 = vmatmul.mubr.bf16.gmra.mrb[0].mxu0 %v760
        %v1228 = vpop.f32.mrb[0].mxu0
        %v1229 = vadd.f32 %v857, %v1228
        %v1230 = vpop.f32.mrb[0].mxu0
        %v1231 = vadd.f32 %v861, %v1230
        %v1232 = vpop.f32.mrb[0].mxu0
        %v1233 = vadd.f32 %v857, %v1232
        %v1234 = vpop.f32.mrb[0].mxu0
        %v1235 = vadd.f32 %v861, %v1234
        %1236 = vmatprep.mubr.bf16.mxu0 %v765
        %1237 = vmatmul.mubr.bf16.gmra.mrb[0].mxu0 %v764
        %v1238 = vpop.f32.mrb[0].mxu0
        %v1239 = vadd.f32 %v857, %v1238
        %v1240 = vpop.f32.mrb[0].mxu0
        %v1241 = vadd.f32 %v861, %v1240
        %v1242 = vpop.f32.mrb[0].mxu0
        %v1243 = vadd.f32 %v857, %v1242
        %v1244 = vpop.f32.mrb[0].mxu0
        %v1245 = vadd.f32 %v861, %v1244
        %1246 = vmatprep.mubr.bf16.mxu0 %v769
        %1247 = vmatmul.mubr.bf16.gmra.mrb[0].mxu0 %v768
        %v1248 = vpop.f32.mrb[0].mxu0
        %v1249 = vadd.f32 %v857, %v1248
        %v1250 = vpop.f32.mrb[0].mxu0
        %v1251 = vadd.f32 %v861, %v1250
        %v1252 = vpop.f32.mrb[0].mxu0
        %v1253 = vadd.f32 %v857, %v1252
        %v1254 = vpop.f32.mrb[0].mxu0
        %v1255 = vadd.f32 %v861, %v1254
        %1256 = vmatprep.mubr.bf16.mxu0 %v773
        %1257 = vmatmul.mubr.bf16.gmra.mrb[0].mxu0 %v772
        %v1258 = vpop.f32.mrb[0].mxu0
        %v1259 = vadd.f32 %v857, %v1258
        %v1260 = vpop.f32.mrb[0].mxu0
        %v1261 = vadd.f32 %v861, %v1260
        %v1262 = vpop.f32.mrb[0].mxu0
        %v1263 = vadd.f32 %v857, %v1262
        %v1264 = vpop.f32.mrb[0].mxu0
        %v1265 = vadd.f32 %v861, %v1264
        %1266 = vmatprep.mubr.bf16.mxu0 %v777
        %1267 = vmatmul.mubr.bf16.gmra.mrb[0].mxu0 %v776
        %v1268 = vpop.f32.mrb[0].mxu0
        %v1269 = vadd.f32 %v857, %v1268
        %v1270 = vpop.f32.mrb[0].mxu0
        %v1271 = vadd.f32 %v861, %v1270
        %v1272 = vpop.f32.mrb[0].mxu0
        %v1273 = vadd.f32 %v857, %v1272
        %v1274 = vpop.f32.mrb[0].mxu0
        %v1275 = vadd.f32 %v861, %v1274
        %1276 = vmatprep.mubr.bf16.mxu0 %v781
        %1277 = vmatmul.mubr.bf16.gmra.mrb[0].mxu0 %v780
        %v1278 = vpop.f32.mrb[0].mxu0
        %v1279 = vadd.f32 %v857, %v1278
        %v1280 = vpop.f32.mrb[0].mxu0
        %v1281 = vadd.f32 %v861, %v1280
        %v1282 = vpop.f32.mrb[0].mxu0
        %v1283 = vadd.f32 %v857, %v1282
        %v1284 = vpop.f32.mrb[0].mxu0
        %v1285 = vadd.f32 %v861, %v1284
        %1286 = vmatprep.mubr.bf16.mxu0 %v785
        %1287 = vmatmul.mubr.bf16.gmra.mrb[0].mxu0 %v784
        %v1288 = vpop.f32.mrb[0].mxu0
        %v1289 = vadd.f32 %v857, %v1288
        %v1290 = vpop.f32.mrb[0].mxu0
        %v1291 = vadd.f32 %v861, %v1290
        %v1292 = vpop.f32.mrb[0].mxu0
        %v1293 = vadd.f32 %v857, %v1292
        %v1294 = vpop.f32.mrb[0].mxu0
        %v1295 = vadd.f32 %v861, %v1294
        %1296 = vdwg.mxu0
        %1297 = vmatprep.subr.bf16.mxu0 %v1089
        %1298 = vmatpush1.bf16.msra.mxu0 %v1088
        %1299 = vmatprep.subr.bf16.mxu0 %v1091
        %1300 = vmatpush1.bf16.msra.mxu0 %v1090
        %1301 = vmatprep.subr.bf16.mxu0 %v1093
        %1302 = vmatpush1.bf16.msra.mxu0 %v1092
        %1303 = vmatprep.subr.bf16.mxu0 %v1095
        %1304 = vmatpush1.bf16.msra.mxu0 %v1094
        %1305 = vmatprep.subr.bf16.mxu0 %v1097
        %1306 = vmatpush1.bf16.msra.mxu0 %v1096
        %1307 = vmatprep.subr.bf16.mxu0 %v1099
        %1308 = vmatpush1.bf16.msra.mxu0 %v1098
        %1309 = vmatprep.subr.bf16.mxu0 %v1101
        %1310 = vmatpush1.bf16.msra.mxu0 %v1100
        %1311 = vmatprep.subr.bf16.mxu0 %v1103
        %1312 = vmatpush1.bf16.msra.mxu0 %v1102
        %1313 = vmatprep.subr.bf16.mxu0 %v1105
        %1314 = vmatpush1.bf16.msra.mxu0 %v1104
        %1315 = vmatprep.subr.bf16.mxu0 %v1107
        %1316 = vmatpush1.bf16.msra.mxu0 %v1106
        %1317 = vmatprep.subr.bf16.mxu0 %v1109
        %1318 = vmatpush1.bf16.msra.mxu0 %v1108
        %1319 = vmatprep.subr.bf16.mxu0 %v1111
        %1320 = vmatpush1.bf16.msra.mxu0 %v1110
        %1321 = vmatprep.subr.bf16.mxu0 %v1113
        %1322 = vmatpush1.bf16.msra.mxu0 %v1112
        %1323 = vmatprep.subr.bf16.mxu0 %v1115
        %1324 = vmatpush1.bf16.msra.mxu0 %v1114
        %1325 = vmatprep.subr.bf16.mxu0 %v1117
        %1326 = vmatpush1.bf16.msra.mxu0 %v1116
        %1327 = vmatprep.subr.bf16.mxu0 %v1119
        %1328 = vmatpush1.bf16.msra.mxu0 %v1118
        %1329 = vmatprep.mubr.bf16.mxu0 %v759
        %1330 = vmatmul.mubr.bf16.gmra.mrb[0].mxu0 %v758
        %v1331 = vpop.f32.mrb[0].mxu0
        %v1332 = vadd.f32 %v1219, %v1331
        %v1333 = vpop.f32.mrb[0].mxu0
        %v1334 = vadd.f32 %v1221, %v1333
        %v1335 = vpop.f32.mrb[0].mxu0
        %v1336 = vadd.f32 %v1223, %v1335
        %v1337 = vpop.f32.mrb[0].mxu0
        %v1338 = vadd.f32 %v1225, %v1337
        %1339 = vmatprep.mubr.bf16.mxu0 %v763
        %1340 = vmatmul.mubr.bf16.gmra.mrb[0].mxu0 %v762
        %v1341 = vpop.f32.mrb[0].mxu0
        %v1342 = vadd.f32 %v1229, %v1341
        %v1343 = vpop.f32.mrb[0].mxu0
        %v1344 = vadd.f32 %v1231, %v1343
        %v1345 = vpop.f32.mrb[0].mxu0
        %v1346 = vadd.f32 %v1233, %v1345
        %v1347 = vpop.f32.mrb[0].mxu0
        %v1348 = vadd.f32 %v1235, %v1347
        %1349 = vmatprep.mubr.bf16.mxu0 %v767
        %1350 = vmatmul.mubr.bf16.gmra.mrb[0].mxu0 %v766
        %v1351 = vpop.f32.mrb[0].mxu0
        %v1352 = vadd.f32 %v1239, %v1351
        %v1353 = vpop.f32.mrb[0].mxu0
        %v1354 = vadd.f32 %v1241, %v1353
        %v1355 = vpop.f32.mrb[0].mxu0
        %v1356 = vadd.f32 %v1243, %v1355
        %v1357 = vpop.f32.mrb[0].mxu0
        %v1358 = vadd.f32 %v1245, %v1357
        %1359 = vmatprep.mubr.bf16.mxu0 %v771
        %1360 = vmatmul.mubr.bf16.gmra.mrb[0].mxu0 %v770
        %v1361 = vpop.f32.mrb[0].mxu0
        %v1362 = vadd.f32 %v1249, %v1361
        %v1363 = vpop.f32.mrb[0].mxu0
        %v1364 = vadd.f32 %v1251, %v1363
        %v1365 = vpop.f32.mrb[0].mxu0
        %v1366 = vadd.f32 %v1253, %v1365
        %v1367 = vpop.f32.mrb[0].mxu0
        %v1368 = vadd.f32 %v1255, %v1367
        %1369 = vmatprep.mubr.bf16.mxu0 %v775
        %1370 = vmatmul.mubr.bf16.gmra.mrb[0].mxu0 %v774
        %v1371 = vpop.f32.mrb[0].mxu0
        %v1372 = vadd.f32 %v1259, %v1371
        %v1373 = vpop.f32.mrb[0].mxu0
        %v1374 = vadd.f32 %v1261, %v1373
        %v1375 = vpop.f32.mrb[0].mxu0
        %v1376 = vadd.f32 %v1263, %v1375
        %v1377 = vpop.f32.mrb[0].mxu0
        %v1378 = vadd.f32 %v1265, %v1377
        %1379 = vmatprep.mubr.bf16.mxu0 %v779
        %1380 = vmatmul.mubr.bf16.gmra.mrb[0].mxu0 %v778
        %v1381 = vpop.f32.mrb[0].mxu0
        %v1382 = vadd.f32 %v1269, %v1381
        %v1383 = vpop.f32.mrb[0].mxu0
        %v1384 = vadd.f32 %v1271, %v1383
        %v1385 = vpop.f32.mrb[0].mxu0
        %v1386 = vadd.f32 %v1273, %v1385
        %v1387 = vpop.f32.mrb[0].mxu0
        %v1388 = vadd.f32 %v1275, %v1387
        %1389 = vmatprep.mubr.bf16.mxu0 %v783
        %1390 = vmatmul.mubr.bf16.gmra.mrb[0].mxu0 %v782
        %v1391 = vpop.f32.mrb[0].mxu0
        %v1392 = vadd.f32 %v1279, %v1391
        %v1393 = vpop.f32.mrb[0].mxu0
        %v1394 = vadd.f32 %v1281, %v1393
        %v1395 = vpop.f32.mrb[0].mxu0
        %v1396 = vadd.f32 %v1283, %v1395
        %v1397 = vpop.f32.mrb[0].mxu0
        %v1398 = vadd.f32 %v1285, %v1397
        %1399 = vmatprep.mubr.bf16.mxu0 %v787
        %1400 = vmatmul.mubr.bf16.gmra.mrb[0].mxu0 %v786
        %v1401 = vpop.f32.mrb[0].mxu0
        %v1402 = vadd.f32 %v1289, %v1401
        %v1403 = vpop.f32.mrb[0].mxu0
        %v1404 = vadd.f32 %v1291, %v1403
        %v1405 = vpop.f32.mrb[0].mxu0
        %v1406 = vadd.f32 %v1293, %v1405
        %v1407 = vpop.f32.mrb[0].mxu0
        %v1408 = vadd.f32 %v1295, %v1407
        %1409 = vdwg.mxu0
        %v1410 = vtanh.pop %v1332
        %v1411 = vtanh.pop %v1334
        %v1412 = vtanh.pop %v1336
        %v1413 = vtanh.pop %v1338
        %v1414 = vtanh.pop %v1342
        %v1415 = vtanh.pop %v1344
        %v1416 = vtanh.pop %v1346
        %v1417 = vtanh.pop %v1348
        %v1418 = vtanh.pop %v1352
        %v1419 = vtanh.pop %v1354
        %v1420 = vtanh.pop %v1356
        %v1421 = vtanh.pop %v1358
        %v1422 = vtanh.pop %v1362
        %v1423 = vtanh.pop %v1364
        %v1424 = vtanh.pop %v1366
        %v1425 = vtanh.pop %v1368
        %v1426 = vtanh.pop %v1372
        %v1427 = vtanh.pop %v1374
        %v1428 = vtanh.pop %v1376
        %v1429 = vtanh.pop %v1378
        %v1430 = vtanh.pop %v1382
        %v1431 = vtanh.pop %v1384
        %v1432 = vtanh.pop %v1386
        %v1433 = vtanh.pop %v1388
        %v1434 = vtanh.pop %v1392
        %v1435 = vtanh.pop %v1394
        %v1436 = vtanh.pop %v1396
        %v1437 = vtanh.pop %v1398
        %v1438 = vtanh.pop %v1402
        %v1439 = vtanh.pop %v1404
        %v1440 = vtanh.pop %v1406
        %v1441 = vtanh.pop %v1408
        %v1442 = vpack.c.bf16 %v1412, %v1410
        %v1443 = vpack.c.bf16 %v1413, %v1411
        %v1444 = vpack.c.bf16 %v1416, %v1414
        %v1445 = vpack.c.bf16 %v1417, %v1415
        %v1446 = vpack.c.bf16 %v1420, %v1418
        %v1447 = vpack.c.bf16 %v1421, %v1419
        %v1448 = vpack.c.bf16 %v1424, %v1422
        %v1449 = vpack.c.bf16 %v1425, %v1423
        %v1450 = vpack.c.bf16 %v1428, %v1426
        %v1451 = vpack.c.bf16 %v1429, %v1427
        %v1452 = vpack.c.bf16 %v1432, %v1430
        %v1453 = vpack.c.bf16 %v1433, %v1431
        %v1454 = vpack.c.bf16 %v1436, %v1434
        %v1455 = vpack.c.bf16 %v1437, %v1435
        %v1456 = vpack.c.bf16 %v1440, %v1438
        %v1457 = vpack.c.bf16 %v1441, %v1439
        %v1458 = vld [vmem:[#allocation7] sm:$0xf]
        %v1459 = vld [vmem:[#allocation7 + $0x4] sm:$0xf]
        %v1460 = vld [vmem:[#allocation7 + $0x8] sm:$0xf]
        %v1461 = vld [vmem:[#allocation7 + $0xc] sm:$0xf]
        %v1462 = vld [vmem:[#allocation7 + $0x10] sm:$0xf]
        %v1463 = vld [vmem:[#allocation7 + $0x14] sm:$0xf]
        %v1464 = vld [vmem:[#allocation7 + $0x18] sm:$0xf]
        %v1465 = vld [vmem:[#allocation7 + $0x1c] sm:$0xf]
        %v1466 = vld [vmem:[#allocation7 + $0x20] sm:$0xf]
        %v1467 = vld [vmem:[#allocation7 + $0x24] sm:$0xf]
        %v1468 = vld [vmem:[#allocation7 + $0x28] sm:$0xf]
        %v1469 = vld [vmem:[#allocation7 + $0x2c] sm:$0xf]
        %v1470 = vld [vmem:[#allocation7 + $0x30] sm:$0xf]
        %v1471 = vld [vmem:[#allocation7 + $0x34] sm:$0xf]
        %v1472 = vld [vmem:[#allocation7 + $0x38] sm:$0xf]
        %v1473 = vld [vmem:[#allocation7 + $0x3c] sm:$0xf]
        %v1474 = vld [vmem:[#allocation7 + $0x40] sm:$0xf]
        %v1475 = vld [vmem:[#allocation7 + $0x44] sm:$0xf]
        %v1476 = vld [vmem:[#allocation7 + $0x48] sm:$0xf]
        %v1477 = vld [vmem:[#allocation7 + $0x4c] sm:$0xf]
        %v1478 = vld [vmem:[#allocation7 + $0x50] sm:$0xf]
        %v1479 = vld [vmem:[#allocation7 + $0x54] sm:$0xf]
        %v1480 = vld [vmem:[#allocation7 + $0x58] sm:$0xf]
        %v1481 = vld [vmem:[#allocation7 + $0x5c] sm:$0xf]
        %v1482 = vld [vmem:[#allocation7 + $0x60] sm:$0xf]
        %v1483 = vld [vmem:[#allocation7 + $0x64] sm:$0xf]
        %v1484 = vld [vmem:[#allocation7 + $0x68] sm:$0xf]
        %v1485 = vld [vmem:[#allocation7 + $0x6c] sm:$0xf]
        %v1486 = vld [vmem:[#allocation7 + $0x70] sm:$0xf]
        %v1487 = vld [vmem:[#allocation7 + $0x74] sm:$0xf]
        %v1488 = vld [vmem:[#allocation7 + $0x78] sm:$0xf]
        %v1489 = vld [vmem:[#allocation7 + $0x7c] sm:$0xf]
        %v1490 = vld [vmem:[%s4] sm:$0x1]
        %v1492 = vlaneseq
        %v1493 = vshrl.u32 %v1492, 7
        %v1494 = vsub.s32 0, %v1493
        %v1495 = vrot.slane %v1490, %v1494
        %v1529 = vunpack.c.l.b16 %v1458
        %v1530 = vunpack.c.l.b16 %v1459
        %v1531 = vunpack.c.l.b16 %v1460
        %v1532 = vunpack.c.l.b16 %v1461
        %v1533 = vunpack.c.l.b16 %v1462
        %v1534 = vunpack.c.l.b16 %v1463
        %v1535 = vunpack.c.l.b16 %v1464
        %v1536 = vunpack.c.l.b16 %v1465
        %v1537 = vunpack.c.l.b16 %v1466
        %v1538 = vunpack.c.l.b16 %v1467
        %v1539 = vunpack.c.l.b16 %v1468
        %v1540 = vunpack.c.l.b16 %v1469
        %v1541 = vunpack.c.l.b16 %v1470
        %v1542 = vunpack.c.l.b16 %v1471
        %v1543 = vunpack.c.l.b16 %v1472
        %v1544 = vunpack.c.l.b16 %v1473
        %v1545 = vunpack.c.l.b16 %v1474
        %v1546 = vunpack.c.l.b16 %v1475
        %v1547 = vunpack.c.l.b16 %v1476
        %v1548 = vunpack.c.l.b16 %v1477
        %v1549 = vunpack.c.l.b16 %v1478
        %v1550 = vunpack.c.l.b16 %v1479
        %v1551 = vunpack.c.l.b16 %v1480
        %v1552 = vunpack.c.l.b16 %v1481
        %v1553 = vunpack.c.l.b16 %v1482
        %v1554 = vunpack.c.l.b16 %v1483
        %v1555 = vunpack.c.l.b16 %v1484
        %v1556 = vunpack.c.l.b16 %v1485
        %v1557 = vunpack.c.l.b16 %v1486
        %v1558 = vunpack.c.l.b16 %v1487
        %v1559 = vunpack.c.l.b16 %v1488
        %v1560 = vunpack.c.l.b16 %v1489
        %v1561 = vpack.c.b16 %v1530, %v1529
        %v1562 = vpack.c.b16 %v1532, %v1531
        %v1563 = vpack.c.b16 %v1534, %v1533
        %v1564 = vpack.c.b16 %v1536, %v1535
        %v1565 = vpack.c.b16 %v1538, %v1537
        %v1566 = vpack.c.b16 %v1540, %v1539
        %v1567 = vpack.c.b16 %v1542, %v1541
        %v1568 = vpack.c.b16 %v1544, %v1543
        %v1569 = vpack.c.b16 %v1546, %v1545
        %v1570 = vpack.c.b16 %v1548, %v1547
        %v1571 = vpack.c.b16 %v1550, %v1549
        %v1572 = vpack.c.b16 %v1552, %v1551
        %v1573 = vpack.c.b16 %v1554, %v1553
        %v1574 = vpack.c.b16 %v1556, %v1555
        %v1575 = vpack.c.b16 %v1558, %v1557
        %v1576 = vpack.c.b16 %v1560, %v1559
        %1593 = vmatprep.subr.bf16.mxu0 0
        %1594 = vmatpush1.bf16.msra.mxu0 %v1561
        %1595 = vmatprep.subr.bf16.mxu0 0
        %1596 = vmatpush1.bf16.msra.mxu0 %v1562
        %1597 = vmatprep.subr.bf16.mxu0 0
        %1598 = vmatpush1.bf16.msra.mxu0 %v1563
        %1599 = vmatprep.subr.bf16.mxu0 0
        %1600 = vmatpush1.bf16.msra.mxu0 %v1564
        %1601 = vmatprep.subr.bf16.mxu0 0
        %1602 = vmatpush1.bf16.msra.mxu0 %v1565
        %1603 = vmatprep.subr.bf16.mxu0 0
        %1604 = vmatpush1.bf16.msra.mxu0 %v1566
        %1605 = vmatprep.subr.bf16.mxu0 0
        %1606 = vmatpush1.bf16.msra.mxu0 %v1567
        %1607 = vmatprep.subr.bf16.mxu0 0
        %1608 = vmatpush1.bf16.msra.mxu0 %v1568
        %1609 = vmatprep.subr.bf16.mxu0 0
        %1610 = vmatpush1.bf16.msra.mxu0 %v1569
        %1611 = vmatprep.subr.bf16.mxu0 0
        %1612 = vmatpush1.bf16.msra.mxu0 %v1570
        %1613 = vmatprep.subr.bf16.mxu0 0
        %1614 = vmatpush1.bf16.msra.mxu0 %v1571
        %1615 = vmatprep.subr.bf16.mxu0 0
        %1616 = vmatpush1.bf16.msra.mxu0 %v1572
        %1617 = vmatprep.subr.bf16.mxu0 0
        %1618 = vmatpush1.bf16.msra.mxu0 %v1573
        %1619 = vmatprep.subr.bf16.mxu0 0
        %1620 = vmatpush1.bf16.msra.mxu0 %v1574
        %1621 = vmatprep.subr.bf16.mxu0 0
        %1622 = vmatpush1.bf16.msra.mxu0 %v1575
        %1623 = vmatprep.subr.bf16.mxu0 0
        %1624 = vmatpush1.bf16.msra.mxu0 %v1576
        %1625 = vmatprep.mubr.bf16.mxu0 %v1443
        %1626 = vmatmul.mubr.bf16.gmra.mrb[0].mxu0 %v1442
        %v1627 = vpop.f32.mrb[0].mxu0
        %v1628 = vadd.f32 %v1495, %v1627
        %v1629 = vpop.f32.mrb[0].mxu0
        %v1630 = vpop.f32.mrb[0].mxu0
        %v1631 = vadd.f32 %v1495, %v1630
        %v1632 = vpop.f32.mrb[0].mxu0
        %1633 = vmatprep.mubr.bf16.mxu0 %v1445
        %1634 = vmatmul.mubr.bf16.gmra.mrb[0].mxu0 %v1444
        %v1635 = vpop.f32.mrb[0].mxu0
        %v1636 = vadd.f32 %v1495, %v1635
        %v1637 = vpop.f32.mrb[0].mxu0
        %v1638 = vpop.f32.mrb[0].mxu0
        %v1639 = vadd.f32 %v1495, %v1638
        %v1640 = vpop.f32.mrb[0].mxu0
        %1641 = vmatprep.mubr.bf16.mxu0 %v1447
        %1642 = vmatmul.mubr.bf16.gmra.mrb[0].mxu0 %v1446
        %v1643 = vpop.f32.mrb[0].mxu0
        %v1644 = vadd.f32 %v1495, %v1643
        %v1645 = vpop.f32.mrb[0].mxu0
        %v1646 = vpop.f32.mrb[0].mxu0
        %v1647 = vadd.f32 %v1495, %v1646
        %v1648 = vpop.f32.mrb[0].mxu0
        %1649 = vmatprep.mubr.bf16.mxu0 %v1449
        %1650 = vmatmul.mubr.bf16.gmra.mrb[0].mxu0 %v1448
        %v1651 = vpop.f32.mrb[0].mxu0
        %v1652 = vadd.f32 %v1495, %v1651
        %v1653 = vpop.f32.mrb[0].mxu0
        %v1654 = vpop.f32.mrb[0].mxu0
        %v1655 = vadd.f32 %v1495, %v1654
        %v1656 = vpop.f32.mrb[0].mxu0
        %1657 = vmatprep.mubr.bf16.mxu0 %v1451
        %1658 = vmatmul.mubr.bf16.gmra.mrb[0].mxu0 %v1450
        %v1659 = vpop.f32.mrb[0].mxu0
        %v1660 = vadd.f32 %v1495, %v1659
        %v1661 = vpop.f32.mrb[0].mxu0
        %v1662 = vpop.f32.mrb[0].mxu0
        %v1663 = vadd.f32 %v1495, %v1662
        %v1664 = vpop.f32.mrb[0].mxu0
        %1665 = vmatprep.mubr.bf16.mxu0 %v1453
        %1666 = vmatmul.mubr.bf16.gmra.mrb[0].mxu0 %v1452
        %v1667 = vpop.f32.mrb[0].mxu0
        %v1668 = vadd.f32 %v1495, %v1667
        %v1669 = vpop.f32.mrb[0].mxu0
        %v1670 = vpop.f32.mrb[0].mxu0
        %v1671 = vadd.f32 %v1495, %v1670
        %v1672 = vpop.f32.mrb[0].mxu0
        %1673 = vmatprep.mubr.bf16.mxu0 %v1455
        %1674 = vmatmul.mubr.bf16.gmra.mrb[0].mxu0 %v1454
        %v1675 = vpop.f32.mrb[0].mxu0
        %v1676 = vadd.f32 %v1495, %v1675
        %v1677 = vpop.f32.mrb[0].mxu0
        %v1678 = vpop.f32.mrb[0].mxu0
        %v1679 = vadd.f32 %v1495, %v1678
        %v1680 = vpop.f32.mrb[0].mxu0
        %1681 = vmatprep.mubr.bf16.mxu0 %v1457
        %1682 = vmatmul.mubr.bf16.gmra.mrb[0].mxu0 %v1456
        %v1683 = vpop.f32.mrb[0].mxu0
        %v1684 = vadd.f32 %v1495, %v1683
        %v1685 = vpop.f32.mrb[0].mxu0
        %v1686 = vpop.f32.mrb[0].mxu0
        %v1687 = vadd.f32 %v1495, %v1686
        %v1688 = vpop.f32.mrb[0].mxu0
        %1689 = vdwg.mxu0
        %1690 = vst [vmem:[%s447] sm:$0xff] %v1628
        %1691 = vst [vmem:[%s447 + $0x8] sm:$0xff] %v1631
        %1692 = vst [vmem:[%s447 + $0x10] sm:$0xff] %v1636
        %1693 = vst [vmem:[%s447 + $0x18] sm:$0xff] %v1639
        %1694 = vst [vmem:[%s447 + $0x20] sm:$0xff] %v1644
        %1695 = vst [vmem:[%s447 + $0x28] sm:$0xff] %v1647
        %1696 = vst [vmem:[%s447 + $0x30] sm:$0xff] %v1652
        %1697 = vst [vmem:[%s447 + $0x38] sm:$0xff] %v1655
        %1698 = vst [vmem:[%s447 + $0x40] sm:$0xff] %v1660
        %1699 = vst [vmem:[%s447 + $0x48] sm:$0xff] %v1663
        %1700 = vst [vmem:[%s447 + $0x50] sm:$0xff] %v1668
        %1701 = vst [vmem:[%s447 + $0x58] sm:$0xff] %v1671
        %1702 = vst [vmem:[%s447 + $0x60] sm:$0xff] %v1676
        %1703 = vst [vmem:[%s447 + $0x68] sm:$0xff] %v1679
        %1704 = vst [vmem:[%s447 + $0x70] sm:$0xff] %v1684
        %1705 = vst [vmem:[%s447 + $0x78] sm:$0xff] %v1687
        %v1706 = vpack.c.bf16 %v1631, %v1628
        %v1707 = vpack.c.bf16 %v1639, %v1636
        %v1708 = vpack.c.bf16 %v1647, %v1644
        %v1709 = vpack.c.bf16 %v1655, %v1652
        %v1710 = vpack.c.bf16 %v1663, %v1660
        %v1711 = vpack.c.bf16 %v1671, %v1668
        %v1712 = vpack.c.bf16 %v1679, %v1676
        %v1713 = vpack.c.bf16 %v1687, %v1684
        %v1714 = vld [vmem:[#allocation8] sm:$0xff]
        %v1715 = vld [vmem:[#allocation8 + $0x8] sm:$0xff]
        %v1716 = vld [vmem:[#allocation8 + $0x10] sm:$0xff]
        %v1717 = vld [vmem:[#allocation8 + $0x18] sm:$0xff]
        %v1718 = vld [vmem:[#allocation8 + $0x20] sm:$0xff]
        %v1719 = vld [vmem:[#allocation8 + $0x28] sm:$0xff]
        %v1720 = vld [vmem:[#allocation8 + $0x30] sm:$0xff]
        %v1721 = vld [vmem:[#allocation8 + $0x38] sm:$0xff]
        %v1722 = vld [vmem:[#allocation8 + $0x40] sm:$0xff]
        %v1723 = vld [vmem:[#allocation8 + $0x48] sm:$0xff]
        %v1724 = vld [vmem:[#allocation8 + $0x50] sm:$0xff]
        %v1725 = vld [vmem:[#allocation8 + $0x58] sm:$0xff]
        %v1726 = vld [vmem:[#allocation8 + $0x60] sm:$0xff]
        %v1727 = vld [vmem:[#allocation8 + $0x68] sm:$0xff]
        %v1728 = vld [vmem:[#allocation8 + $0x70] sm:$0xff]
        %v1729 = vld [vmem:[#allocation8 + $0x78] sm:$0xff]
        %v1730 = vld [vmem:[%s6] sm:$0x3]
        %v1732 = vlaneseq
        %v1733 = vshrl.u32 %v1732, 7
        %v1734 = vsub.s32 0, %v1733
        %v1735 = vrot.slane %v1730, %v1734
        %v1736 = vlaneseq
        %v1737 = vshrl.u32 %v1736, 7
        %v1738 = vsub.s32 1, %v1737
        %v1739 = vrot.slane %v1730, %v1738
        %v1758 = vunpack.c.l.b16 %v1714
        %v1759 = vunpack.c.h.b16 %v1714
        %v1760 = vunpack.c.l.b16 %v1715
        %v1761 = vunpack.c.h.b16 %v1715
        %v1762 = vunpack.c.l.b16 %v1716
        %v1763 = vunpack.c.h.b16 %v1716
        %v1764 = vunpack.c.l.b16 %v1717
        %v1765 = vunpack.c.h.b16 %v1717
        %v1766 = vunpack.c.l.b16 %v1718
        %v1767 = vunpack.c.h.b16 %v1718
        %v1768 = vunpack.c.l.b16 %v1719
        %v1769 = vunpack.c.h.b16 %v1719
        %v1770 = vunpack.c.l.b16 %v1720
        %v1771 = vunpack.c.h.b16 %v1720
        %v1772 = vunpack.c.l.b16 %v1721
        %v1773 = vunpack.c.h.b16 %v1721
        %v1774 = vunpack.c.l.b16 %v1722
        %v1775 = vunpack.c.h.b16 %v1722
        %v1776 = vunpack.c.l.b16 %v1723
        %v1777 = vunpack.c.h.b16 %v1723
        %v1778 = vunpack.c.l.b16 %v1724
        %v1779 = vunpack.c.h.b16 %v1724
        %v1780 = vunpack.c.l.b16 %v1725
        %v1781 = vunpack.c.h.b16 %v1725
        %v1782 = vunpack.c.l.b16 %v1726
        %v1783 = vunpack.c.h.b16 %v1726
        %v1784 = vunpack.c.l.b16 %v1727
        %v1785 = vunpack.c.h.b16 %v1727
        %v1786 = vunpack.c.l.b16 %v1728
        %v1787 = vunpack.c.h.b16 %v1728
        %v1788 = vunpack.c.l.b16 %v1729
        %v1789 = vunpack.c.h.b16 %v1729
        %v1790 = vpack.c.b16 %v1760, %v1758
        %v1791 = vpack.c.b16 %v1761, %v1759
        %v1792 = vpack.c.b16 %v1764, %v1762
        %v1793 = vpack.c.b16 %v1765, %v1763
        %v1794 = vpack.c.b16 %v1768, %v1766
        %v1795 = vpack.c.b16 %v1769, %v1767
        %v1796 = vpack.c.b16 %v1772, %v1770
        %v1797 = vpack.c.b16 %v1773, %v1771
        %v1798 = vpack.c.b16 %v1776, %v1774
        %v1799 = vpack.c.b16 %v1777, %v1775
        %v1800 = vpack.c.b16 %v1780, %v1778
        %v1801 = vpack.c.b16 %v1781, %v1779
        %v1802 = vpack.c.b16 %v1784, %v1782
        %v1803 = vpack.c.b16 %v1785, %v1783
        %v1804 = vpack.c.b16 %v1788, %v1786
        %v1805 = vpack.c.b16 %v1789, %v1787
        %1822 = vmatprep.subr.bf16.mxu0 %v1791
        %1823 = vmatpush1.bf16.msra.mxu0 %v1790
        %1824 = vmatprep.subr.bf16.mxu0 %v1793
        %1825 = vmatpush1.bf16.msra.mxu0 %v1792
        %1826 = vmatprep.subr.bf16.mxu0 %v1795
        %1827 = vmatpush1.bf16.msra.mxu0 %v1794
        %1828 = vmatprep.subr.bf16.mxu0 %v1797
        %1829 = vmatpush1.bf16.msra.mxu0 %v1796
        %1830 = vmatprep.subr.bf16.mxu0 %v1799
        %1831 = vmatpush1.bf16.msra.mxu0 %v1798
        %1832 = vmatprep.subr.bf16.mxu0 %v1801
        %1833 = vmatpush1.bf16.msra.mxu0 %v1800
        %1834 = vmatprep.subr.bf16.mxu0 %v1803
        %1835 = vmatpush1.bf16.msra.mxu0 %v1802
        %1836 = vmatprep.subr.bf16.mxu0 %v1805
        %1837 = vmatpush1.bf16.msra.mxu0 %v1804
        %1838 = vmatprep.subr.bf16.mxu0 0
        %1839 = vmatpush1.bf16.msra.mxu0 0
        %1840 = vmatprep.subr.bf16.mxu0 0
        %1841 = vmatpush1.bf16.msra.mxu0 0
        %1842 = vmatprep.subr.bf16.mxu0 0
        %1843 = vmatpush1.bf16.msra.mxu0 0
        %1844 = vmatprep.subr.bf16.mxu0 0
        %1845 = vmatpush1.bf16.msra.mxu0 0
        %1846 = vmatprep.subr.bf16.mxu0 0
        %1847 = vmatpush1.bf16.msra.mxu0 0
        %1848 = vmatprep.subr.bf16.mxu0 0
        %1849 = vmatpush1.bf16.msra.mxu0 0
        %1850 = vmatprep.subr.bf16.mxu0 0
        %1851 = vmatpush1.bf16.msra.mxu0 0
        %1852 = vmatprep.subr.bf16.mxu0 0
        %1853 = vmatpush1.bf16.msra.mxu0 0
        %1854 = vmatprep.mubr.bf16.mxu0 0
        %1855 = vmatmul.mubr.bf16.gmra.mrb[0].mxu0 %v1706
        %v1856 = vpop.f32.mrb[0].mxu0
        %v1857 = vadd.f32 %v1735, %v1856
        %v1858 = vpop.f32.mrb[0].mxu0
        %v1859 = vadd.f32 %v1739, %v1858
        %v1860 = vpop.f32.mrb[0].mxu0
        %v1861 = vadd.f32 %v1735, %v1860
        %v1862 = vpop.f32.mrb[0].mxu0
        %v1863 = vadd.f32 %v1739, %v1862
        %1864 = vmatprep.mubr.bf16.mxu0 0
        %1865 = vmatmul.mubr.bf16.gmra.mrb[0].mxu0 %v1707
        %v1866 = vpop.f32.mrb[0].mxu0
        %v1867 = vadd.f32 %v1735, %v1866
        %v1868 = vpop.f32.mrb[0].mxu0
        %v1869 = vadd.f32 %v1739, %v1868
        %v1870 = vpop.f32.mrb[0].mxu0
        %v1871 = vadd.f32 %v1735, %v1870
        %v1872 = vpop.f32.mrb[0].mxu0
        %v1873 = vadd.f32 %v1739, %v1872
        %1874 = vmatprep.mubr.bf16.mxu0 0
        %1875 = vmatmul.mubr.bf16.gmra.mrb[0].mxu0 %v1708
        %v1876 = vpop.f32.mrb[0].mxu0
        %v1877 = vadd.f32 %v1735, %v1876
        %v1878 = vpop.f32.mrb[0].mxu0
        %v1879 = vadd.f32 %v1739, %v1878
        %v1880 = vpop.f32.mrb[0].mxu0
        %v1881 = vadd.f32 %v1735, %v1880
        %v1882 = vpop.f32.mrb[0].mxu0
        %v1883 = vadd.f32 %v1739, %v1882
        %1884 = vmatprep.mubr.bf16.mxu0 0
        %1885 = vmatmul.mubr.bf16.gmra.mrb[0].mxu0 %v1709
        %v1886 = vpop.f32.mrb[0].mxu0
        %v1887 = vadd.f32 %v1735, %v1886
        %v1888 = vpop.f32.mrb[0].mxu0
        %v1889 = vadd.f32 %v1739, %v1888
        %v1890 = vpop.f32.mrb[0].mxu0
        %v1891 = vadd.f32 %v1735, %v1890
        %v1892 = vpop.f32.mrb[0].mxu0
        %v1893 = vadd.f32 %v1739, %v1892
        %1894 = vmatprep.mubr.bf16.mxu0 0
        %1895 = vmatmul.mubr.bf16.gmra.mrb[0].mxu0 %v1710
        %v1896 = vpop.f32.mrb[0].mxu0
        %v1897 = vadd.f32 %v1735, %v1896
        %v1898 = vpop.f32.mrb[0].mxu0
        %v1899 = vadd.f32 %v1739, %v1898
        %v1900 = vpop.f32.mrb[0].mxu0
        %v1901 = vadd.f32 %v1735, %v1900
        %v1902 = vpop.f32.mrb[0].mxu0
        %v1903 = vadd.f32 %v1739, %v1902
        %1904 = vmatprep.mubr.bf16.mxu0 0
        %1905 = vmatmul.mubr.bf16.gmra.mrb[0].mxu0 %v1711
        %v1906 = vpop.f32.mrb[0].mxu0
        %v1907 = vadd.f32 %v1735, %v1906
        %v1908 = vpop.f32.mrb[0].mxu0
        %v1909 = vadd.f32 %v1739, %v1908
        %v1910 = vpop.f32.mrb[0].mxu0
        %v1911 = vadd.f32 %v1735, %v1910
        %v1912 = vpop.f32.mrb[0].mxu0
        %v1913 = vadd.f32 %v1739, %v1912
        %1914 = vmatprep.mubr.bf16.mxu0 0
        %1915 = vmatmul.mubr.bf16.gmra.mrb[0].mxu0 %v1712
        %v1916 = vpop.f32.mrb[0].mxu0
        %v1917 = vadd.f32 %v1735, %v1916
        %v1918 = vpop.f32.mrb[0].mxu0
        %v1919 = vadd.f32 %v1739, %v1918
        %v1920 = vpop.f32.mrb[0].mxu0
        %v1921 = vadd.f32 %v1735, %v1920
        %v1922 = vpop.f32.mrb[0].mxu0
        %v1923 = vadd.f32 %v1739, %v1922
        %1924 = vmatprep.mubr.bf16.mxu0 0
        %1925 = vmatmul.mubr.bf16.gmra.mrb[0].mxu0 %v1713
        %v1926 = vpop.f32.mrb[0].mxu0
        %v1927 = vadd.f32 %v1735, %v1926
        %v1928 = vpop.f32.mrb[0].mxu0
        %v1929 = vadd.f32 %v1739, %v1928
        %v1930 = vpop.f32.mrb[0].mxu0
        %v1931 = vadd.f32 %v1735, %v1930
        %v1932 = vpop.f32.mrb[0].mxu0
        %v1933 = vadd.f32 %v1739, %v1932
        %1934 = vdwg.mxu0
        %v1935 = vtanh.pop %v1857
        %v1936 = vtanh.pop %v1859
        %v1937 = vtanh.pop %v1861
        %v1938 = vtanh.pop %v1863
        %v1939 = vtanh.pop %v1867
        %v1940 = vtanh.pop %v1869
        %v1941 = vtanh.pop %v1871
        %v1942 = vtanh.pop %v1873
        %v1943 = vtanh.pop %v1877
        %v1944 = vtanh.pop %v1879
        %v1945 = vtanh.pop %v1881
        %v1946 = vtanh.pop %v1883
        %v1947 = vtanh.pop %v1887
        %v1948 = vtanh.pop %v1889
        %v1949 = vtanh.pop %v1891
        %v1950 = vtanh.pop %v1893
        %v1951 = vtanh.pop %v1897
        %v1952 = vtanh.pop %v1899
        %v1953 = vtanh.pop %v1901
        %v1954 = vtanh.pop %v1903
        %v1955 = vtanh.pop %v1907
        %v1956 = vtanh.pop %v1909
        %v1957 = vtanh.pop %v1911
        %v1958 = vtanh.pop %v1913
        %v1959 = vtanh.pop %v1917
        %v1960 = vtanh.pop %v1919
        %v1961 = vtanh.pop %v1921
        %v1962 = vtanh.pop %v1923
        %v1963 = vtanh.pop %v1927
        %v1964 = vtanh.pop %v1929
        %v1965 = vtanh.pop %v1931
        %v1966 = vtanh.pop %v1933
        %v1967 = vpack.c.bf16 %v1937, %v1935
        %v1968 = vpack.c.bf16 %v1938, %v1936
        %v1969 = vpack.c.bf16 %v1941, %v1939
        %v1970 = vpack.c.bf16 %v1942, %v1940
        %v1971 = vpack.c.bf16 %v1945, %v1943
        %v1972 = vpack.c.bf16 %v1946, %v1944
        %v1973 = vpack.c.bf16 %v1949, %v1947
        %v1974 = vpack.c.bf16 %v1950, %v1948
        %v1975 = vpack.c.bf16 %v1953, %v1951
        %v1976 = vpack.c.bf16 %v1954, %v1952
        %v1977 = vpack.c.bf16 %v1957, %v1955
        %v1978 = vpack.c.bf16 %v1958, %v1956
        %v1979 = vpack.c.bf16 %v1961, %v1959
        %v1980 = vpack.c.bf16 %v1962, %v1960
        %v1981 = vpack.c.bf16 %v1965, %v1963
        %v1982 = vpack.c.bf16 %v1966, %v1964
        %v1983 = vld [vmem:[#allocation10] sm:$0xff]
        %v1984 = vld [vmem:[#allocation10 + $0x8] sm:$0xff]
        %v1985 = vld [vmem:[#allocation10 + $0x10] sm:$0xff]
        %v1986 = vld [vmem:[#allocation10 + $0x18] sm:$0xff]
        %v1987 = vld [vmem:[#allocation10 + $0x20] sm:$0xff]
        %v1988 = vld [vmem:[#allocation10 + $0x28] sm:$0xff]
        %v1989 = vld [vmem:[#allocation10 + $0x30] sm:$0xff]
        %v1990 = vld [vmem:[#allocation10 + $0x38] sm:$0xff]
        %v1991 = vld [vmem:[#allocation10 + $0x40] sm:$0xff]
        %v1992 = vld [vmem:[#allocation10 + $0x48] sm:$0xff]
        %v1993 = vld [vmem:[#allocation10 + $0x50] sm:$0xff]
        %v1994 = vld [vmem:[#allocation10 + $0x58] sm:$0xff]
        %v1995 = vld [vmem:[#allocation10 + $0x60] sm:$0xff]
        %v1996 = vld [vmem:[#allocation10 + $0x68] sm:$0xff]
        %v1997 = vld [vmem:[#allocation10 + $0x70] sm:$0xff]
        %v1998 = vld [vmem:[#allocation10 + $0x78] sm:$0xff]
        %v1999 = vld [vmem:[#allocation10 + $0x80] sm:$0xff]
        %v2000 = vld [vmem:[#allocation10 + $0x88] sm:$0xff]
        %v2001 = vld [vmem:[#allocation10 + $0x90] sm:$0xff]
        %v2002 = vld [vmem:[#allocation10 + $0x98] sm:$0xff]
        %v2003 = vld [vmem:[#allocation10 + $0xa0] sm:$0xff]
        %v2004 = vld [vmem:[#allocation10 + $0xa8] sm:$0xff]
        %v2005 = vld [vmem:[#allocation10 + $0xb0] sm:$0xff]
        %v2006 = vld [vmem:[#allocation10 + $0xb8] sm:$0xff]
        %v2007 = vld [vmem:[#allocation10 + $0xc0] sm:$0xff]
        %v2008 = vld [vmem:[#allocation10 + $0xc8] sm:$0xff]
        %v2009 = vld [vmem:[#allocation10 + $0xd0] sm:$0xff]
        %v2010 = vld [vmem:[#allocation10 + $0xd8] sm:$0xff]
        %v2011 = vld [vmem:[#allocation10 + $0xe0] sm:$0xff]
        %v2012 = vld [vmem:[#allocation10 + $0xe8] sm:$0xff]
        %v2013 = vld [vmem:[#allocation10 + $0xf0] sm:$0xff]
        %v2014 = vld [vmem:[#allocation10 + $0xf8] sm:$0xff]
        %v2015 = vld [vmem:[#allocation10 + $0x100] sm:$0xff]
        %v2016 = vld [vmem:[#allocation10 + $0x108] sm:$0xff]
        %v2017 = vld [vmem:[#allocation10 + $0x110] sm:$0xff]
        %v2018 = vld [vmem:[#allocation10 + $0x118] sm:$0xff]
        %v2019 = vld [vmem:[#allocation10 + $0x120] sm:$0xff]
        %v2020 = vld [vmem:[#allocation10 + $0x128] sm:$0xff]
        %v2021 = vld [vmem:[#allocation10 + $0x130] sm:$0xff]
        %v2022 = vld [vmem:[#allocation10 + $0x138] sm:$0xff]
        %v2023 = vld [vmem:[#allocation10 + $0x140] sm:$0xff]
        %v2024 = vld [vmem:[#allocation10 + $0x148] sm:$0xff]
        %v2025 = vld [vmem:[#allocation10 + $0x150] sm:$0xff]
        %v2026 = vld [vmem:[#allocation10 + $0x158] sm:$0xff]
        %v2027 = vld [vmem:[#allocation10 + $0x160] sm:$0xff]
        %v2028 = vld [vmem:[#allocation10 + $0x168] sm:$0xff]
        %v2029 = vld [vmem:[#allocation10 + $0x170] sm:$0xff]
        %v2030 = vld [vmem:[#allocation10 + $0x178] sm:$0xff]
        %v2031 = vld [vmem:[#allocation10 + $0x180] sm:$0xff]
        %v2032 = vld [vmem:[#allocation10 + $0x188] sm:$0xff]
        %v2033 = vld [vmem:[#allocation10 + $0x190] sm:$0xff]
        %v2034 = vld [vmem:[#allocation10 + $0x198] sm:$0xff]
        %v2035 = vld [vmem:[#allocation10 + $0x1a0] sm:$0xff]
        %v2036 = vld [vmem:[#allocation10 + $0x1a8] sm:$0xff]
        %v2037 = vld [vmem:[#allocation10 + $0x1b0] sm:$0xff]
        %v2038 = vld [vmem:[#allocation10 + $0x1b8] sm:$0xff]
        %v2039 = vld [vmem:[#allocation10 + $0x1c0] sm:$0xff]
        %v2040 = vld [vmem:[#allocation10 + $0x1c8] sm:$0xff]
        %v2041 = vld [vmem:[#allocation10 + $0x1d0] sm:$0xff]
        %v2042 = vld [vmem:[#allocation10 + $0x1d8] sm:$0xff]
        %v2043 = vld [vmem:[#allocation10 + $0x1e0] sm:$0xff]
        %v2044 = vld [vmem:[#allocation10 + $0x1e8] sm:$0xff]
        %v2045 = vld [vmem:[#allocation10 + $0x1f0] sm:$0xff]
        %v2046 = vld [vmem:[#allocation10 + $0x1f8] sm:$0xff]
        %v2047 = vld [vmem:[%s8] sm:$0xf]
        %v2049 = vlaneseq
        %v2050 = vshrl.u32 %v2049, 7
        %v2051 = vsub.s32 0, %v2050
        %v2052 = vrot.slane %v2047, %v2051
        %v2053 = vlaneseq
        %v2054 = vshrl.u32 %v2053, 7
        %v2055 = vsub.s32 1, %v2054
        %v2056 = vrot.slane %v2047, %v2055
        %v2057 = vlaneseq
        %v2058 = vshrl.u32 %v2057, 7
        %v2059 = vsub.s32 2, %v2058
        %v2060 = vrot.slane %v2047, %v2059
        %v2061 = vlaneseq
        %v2062 = vshrl.u32 %v2061, 7
        %v2063 = vsub.s32 3, %v2062
        %v2064 = vrot.slane %v2047, %v2063
        %v2133 = vunpack.c.l.b16 %v1983
        %v2134 = vunpack.c.h.b16 %v1983
        %v2135 = vunpack.c.l.b16 %v1984
        %v2136 = vunpack.c.h.b16 %v1984
        %v2137 = vunpack.c.l.b16 %v1985
        %v2138 = vunpack.c.h.b16 %v1985
        %v2139 = vunpack.c.l.b16 %v1986
        %v2140 = vunpack.c.h.b16 %v1986
        %v2141 = vunpack.c.l.b16 %v1987
        %v2142 = vunpack.c.h.b16 %v1987
        %v2143 = vunpack.c.l.b16 %v1988
        %v2144 = vunpack.c.h.b16 %v1988
        %v2145 = vunpack.c.l.b16 %v1989
        %v2146 = vunpack.c.h.b16 %v1989
        %v2147 = vunpack.c.l.b16 %v1990
        %v2148 = vunpack.c.h.b16 %v1990
        %v2149 = vunpack.c.l.b16 %v1991
        %v2150 = vunpack.c.h.b16 %v1991
        %v2151 = vunpack.c.l.b16 %v1992
        %v2152 = vunpack.c.h.b16 %v1992
        %v2153 = vunpack.c.l.b16 %v1993
        %v2154 = vunpack.c.h.b16 %v1993
        %v2155 = vunpack.c.l.b16 %v1994
        %v2156 = vunpack.c.h.b16 %v1994
        %v2157 = vunpack.c.l.b16 %v1995
        %v2158 = vunpack.c.h.b16 %v1995
        %v2159 = vunpack.c.l.b16 %v1996
        %v2160 = vunpack.c.h.b16 %v1996
        %v2161 = vunpack.c.l.b16 %v1997
        %v2162 = vunpack.c.h.b16 %v1997
        %v2163 = vunpack.c.l.b16 %v1998
        %v2164 = vunpack.c.h.b16 %v1998
        %v2165 = vunpack.c.l.b16 %v1999
        %v2166 = vunpack.c.h.b16 %v1999
        %v2167 = vunpack.c.l.b16 %v2000
        %v2168 = vunpack.c.h.b16 %v2000
        %v2169 = vunpack.c.l.b16 %v2001
        %v2170 = vunpack.c.h.b16 %v2001
        %v2171 = vunpack.c.l.b16 %v2002
        %v2172 = vunpack.c.h.b16 %v2002
        %v2173 = vunpack.c.l.b16 %v2003
        %v2174 = vunpack.c.h.b16 %v2003
        %v2175 = vunpack.c.l.b16 %v2004
        %v2176 = vunpack.c.h.b16 %v2004
        %v2177 = vunpack.c.l.b16 %v2005
        %v2178 = vunpack.c.h.b16 %v2005
        %v2179 = vunpack.c.l.b16 %v2006
        %v2180 = vunpack.c.h.b16 %v2006
        %v2181 = vunpack.c.l.b16 %v2007
        %v2182 = vunpack.c.h.b16 %v2007
        %v2183 = vunpack.c.l.b16 %v2008
        %v2184 = vunpack.c.h.b16 %v2008
        %v2185 = vunpack.c.l.b16 %v2009
        %v2186 = vunpack.c.h.b16 %v2009
        %v2187 = vunpack.c.l.b16 %v2010
        %v2188 = vunpack.c.h.b16 %v2010
        %v2189 = vunpack.c.l.b16 %v2011
        %v2190 = vunpack.c.h.b16 %v2011
        %v2191 = vunpack.c.l.b16 %v2012
        %v2192 = vunpack.c.h.b16 %v2012
        %v2193 = vunpack.c.l.b16 %v2013
        %v2194 = vunpack.c.h.b16 %v2013
        %v2195 = vunpack.c.l.b16 %v2014
        %v2196 = vunpack.c.h.b16 %v2014
        %v2197 = vunpack.c.l.b16 %v2015
        %v2198 = vunpack.c.h.b16 %v2015
        %v2199 = vunpack.c.l.b16 %v2016
        %v2200 = vunpack.c.h.b16 %v2016
        %v2201 = vunpack.c.l.b16 %v2017
        %v2202 = vunpack.c.h.b16 %v2017
        %v2203 = vunpack.c.l.b16 %v2018
        %v2204 = vunpack.c.h.b16 %v2018
        %v2205 = vunpack.c.l.b16 %v2019
        %v2206 = vunpack.c.h.b16 %v2019
        %v2207 = vunpack.c.l.b16 %v2020
        %v2208 = vunpack.c.h.b16 %v2020
        %v2209 = vunpack.c.l.b16 %v2021
        %v2210 = vunpack.c.h.b16 %v2021
        %v2211 = vunpack.c.l.b16 %v2022
        %v2212 = vunpack.c.h.b16 %v2022
        %v2213 = vunpack.c.l.b16 %v2023
        %v2214 = vunpack.c.h.b16 %v2023
        %v2215 = vunpack.c.l.b16 %v2024
        %v2216 = vunpack.c.h.b16 %v2024
        %v2217 = vunpack.c.l.b16 %v2025
        %v2218 = vunpack.c.h.b16 %v2025
        %v2219 = vunpack.c.l.b16 %v2026
        %v2220 = vunpack.c.h.b16 %v2026
        %v2221 = vunpack.c.l.b16 %v2027
        %v2222 = vunpack.c.h.b16 %v2027
        %v2223 = vunpack.c.l.b16 %v2028
        %v2224 = vunpack.c.h.b16 %v2028
        %v2225 = vunpack.c.l.b16 %v2029
        %v2226 = vunpack.c.h.b16 %v2029
        %v2227 = vunpack.c.l.b16 %v2030
        %v2228 = vunpack.c.h.b16 %v2030
        %v2229 = vunpack.c.l.b16 %v2031
        %v2230 = vunpack.c.h.b16 %v2031
        %v2231 = vunpack.c.l.b16 %v2032
        %v2232 = vunpack.c.h.b16 %v2032
        %v2233 = vunpack.c.l.b16 %v2033
        %v2234 = vunpack.c.h.b16 %v2033
        %v2235 = vunpack.c.l.b16 %v2034
        %v2236 = vunpack.c.h.b16 %v2034
        %v2237 = vunpack.c.l.b16 %v2035
        %v2238 = vunpack.c.h.b16 %v2035
        %v2239 = vunpack.c.l.b16 %v2036
        %v2240 = vunpack.c.h.b16 %v2036
        %v2241 = vunpack.c.l.b16 %v2037
        %v2242 = vunpack.c.h.b16 %v2037
        %v2243 = vunpack.c.l.b16 %v2038
        %v2244 = vunpack.c.h.b16 %v2038
        %v2245 = vunpack.c.l.b16 %v2039
        %v2246 = vunpack.c.h.b16 %v2039
        %v2247 = vunpack.c.l.b16 %v2040
        %v2248 = vunpack.c.h.b16 %v2040
        %v2249 = vunpack.c.l.b16 %v2041
        %v2250 = vunpack.c.h.b16 %v2041
        %v2251 = vunpack.c.l.b16 %v2042
        %v2252 = vunpack.c.h.b16 %v2042
        %v2253 = vunpack.c.l.b16 %v2043
        %v2254 = vunpack.c.h.b16 %v2043
        %v2255 = vunpack.c.l.b16 %v2044
        %v2256 = vunpack.c.h.b16 %v2044
        %v2257 = vunpack.c.l.b16 %v2045
        %v2258 = vunpack.c.h.b16 %v2045
        %v2259 = vunpack.c.l.b16 %v2046
        %v2260 = vunpack.c.h.b16 %v2046
        %v2261 = vpack.c.b16 %v2137, %v2133
        %v2262 = vpack.c.b16 %v2138, %v2134
        %v2263 = vpack.c.b16 %v2139, %v2135
        %v2264 = vpack.c.b16 %v2140, %v2136
        %v2265 = vpack.c.b16 %v2145, %v2141
        %v2266 = vpack.c.b16 %v2146, %v2142
        %v2267 = vpack.c.b16 %v2147, %v2143
        %v2268 = vpack.c.b16 %v2148, %v2144
        %v2269 = vpack.c.b16 %v2153, %v2149
        %v2270 = vpack.c.b16 %v2154, %v2150
        %v2271 = vpack.c.b16 %v2155, %v2151
        %v2272 = vpack.c.b16 %v2156, %v2152
        %v2273 = vpack.c.b16 %v2161, %v2157
        %v2274 = vpack.c.b16 %v2162, %v2158
        %v2275 = vpack.c.b16 %v2163, %v2159
        %v2276 = vpack.c.b16 %v2164, %v2160
        %v2277 = vpack.c.b16 %v2169, %v2165
        %v2278 = vpack.c.b16 %v2170, %v2166
        %v2279 = vpack.c.b16 %v2171, %v2167
        %v2280 = vpack.c.b16 %v2172, %v2168
        %v2281 = vpack.c.b16 %v2177, %v2173
        %v2282 = vpack.c.b16 %v2178, %v2174
        %v2283 = vpack.c.b16 %v2179, %v2175
        %v2284 = vpack.c.b16 %v2180, %v2176
        %v2285 = vpack.c.b16 %v2185, %v2181
        %v2286 = vpack.c.b16 %v2186, %v2182
        %v2287 = vpack.c.b16 %v2187, %v2183
        %v2288 = vpack.c.b16 %v2188, %v2184
        %v2289 = vpack.c.b16 %v2193, %v2189
        %v2290 = vpack.c.b16 %v2194, %v2190
        %v2291 = vpack.c.b16 %v2195, %v2191
        %v2292 = vpack.c.b16 %v2196, %v2192
        %v2293 = vpack.c.b16 %v2201, %v2197
        %v2294 = vpack.c.b16 %v2202, %v2198
        %v2295 = vpack.c.b16 %v2203, %v2199
        %v2296 = vpack.c.b16 %v2204, %v2200
        %v2297 = vpack.c.b16 %v2209, %v2205
        %v2298 = vpack.c.b16 %v2210, %v2206
        %v2299 = vpack.c.b16 %v2211, %v2207
        %v2300 = vpack.c.b16 %v2212, %v2208
        %v2301 = vpack.c.b16 %v2217, %v2213
        %v2302 = vpack.c.b16 %v2218, %v2214
        %v2303 = vpack.c.b16 %v2219, %v2215
        %v2304 = vpack.c.b16 %v2220, %v2216
        %v2305 = vpack.c.b16 %v2225, %v2221
        %v2306 = vpack.c.b16 %v2226, %v2222
        %v2307 = vpack.c.b16 %v2227, %v2223
        %v2308 = vpack.c.b16 %v2228, %v2224
        %v2309 = vpack.c.b16 %v2233, %v2229
        %v2310 = vpack.c.b16 %v2234, %v2230
        %v2311 = vpack.c.b16 %v2235, %v2231
        %v2312 = vpack.c.b16 %v2236, %v2232
        %v2313 = vpack.c.b16 %v2241, %v2237
        %v2314 = vpack.c.b16 %v2242, %v2238
        %v2315 = vpack.c.b16 %v2243, %v2239
        %v2316 = vpack.c.b16 %v2244, %v2240
        %v2317 = vpack.c.b16 %v2249, %v2245
        %v2318 = vpack.c.b16 %v2250, %v2246
        %v2319 = vpack.c.b16 %v2251, %v2247
        %v2320 = vpack.c.b16 %v2252, %v2248
        %v2321 = vpack.c.b16 %v2257, %v2253
        %v2322 = vpack.c.b16 %v2258, %v2254
        %v2323 = vpack.c.b16 %v2259, %v2255
        %v2324 = vpack.c.b16 %v2260, %v2256
        %2389 = vmatprep.subr.bf16.mxu0 %v2262
        %2390 = vmatpush1.bf16.msra.mxu0 %v2261
        %2391 = vmatprep.subr.bf16.mxu0 %v2266
        %2392 = vmatpush1.bf16.msra.mxu0 %v2265
        %2393 = vmatprep.subr.bf16.mxu0 %v2270
        %2394 = vmatpush1.bf16.msra.mxu0 %v2269
        %2395 = vmatprep.subr.bf16.mxu0 %v2274
        %2396 = vmatpush1.bf16.msra.mxu0 %v2273
        %2397 = vmatprep.subr.bf16.mxu0 %v2278
        %2398 = vmatpush1.bf16.msra.mxu0 %v2277
        %2399 = vmatprep.subr.bf16.mxu0 %v2282
        %2400 = vmatpush1.bf16.msra.mxu0 %v2281
        %2401 = vmatprep.subr.bf16.mxu0 %v2286
        %2402 = vmatpush1.bf16.msra.mxu0 %v2285
        %2403 = vmatprep.subr.bf16.mxu0 %v2290
        %2404 = vmatpush1.bf16.msra.mxu0 %v2289
        %2405 = vmatprep.subr.bf16.mxu0 %v2294
        %2406 = vmatpush1.bf16.msra.mxu0 %v2293
        %2407 = vmatprep.subr.bf16.mxu0 %v2298
        %2408 = vmatpush1.bf16.msra.mxu0 %v2297
        %2409 = vmatprep.subr.bf16.mxu0 %v2302
        %2410 = vmatpush1.bf16.msra.mxu0 %v2301
        %2411 = vmatprep.subr.bf16.mxu0 %v2306
        %2412 = vmatpush1.bf16.msra.mxu0 %v2305
        %2413 = vmatprep.subr.bf16.mxu0 %v2310
        %2414 = vmatpush1.bf16.msra.mxu0 %v2309
        %2415 = vmatprep.subr.bf16.mxu0 %v2314
        %2416 = vmatpush1.bf16.msra.mxu0 %v2313
        %2417 = vmatprep.subr.bf16.mxu0 %v2318
        %2418 = vmatpush1.bf16.msra.mxu0 %v2317
        %2419 = vmatprep.subr.bf16.mxu0 %v2322
        %2420 = vmatpush1.bf16.msra.mxu0 %v2321
        %2421 = vmatprep.mubr.bf16.mxu0 %v1968
        %2422 = vmatmul.mubr.bf16.gmra.mrb[0].mxu0 %v1967
        %v2423 = vpop.f32.mrb[0].mxu0
        %v2424 = vadd.f32 %v2052, %v2423
        %v2425 = vpop.f32.mrb[0].mxu0
        %v2426 = vadd.f32 %v2056, %v2425
        %v2427 = vpop.f32.mrb[0].mxu0
        %v2428 = vadd.f32 %v2052, %v2427
        %v2429 = vpop.f32.mrb[0].mxu0
        %v2430 = vadd.f32 %v2056, %v2429
        %2431 = vmatprep.mubr.bf16.mxu0 %v1970
        %2432 = vmatmul.mubr.bf16.gmra.mrb[0].mxu0 %v1969
        %v2433 = vpop.f32.mrb[0].mxu0
        %v2434 = vadd.f32 %v2052, %v2433
        %v2435 = vpop.f32.mrb[0].mxu0
        %v2436 = vadd.f32 %v2056, %v2435
        %v2437 = vpop.f32.mrb[0].mxu0
        %v2438 = vadd.f32 %v2052, %v2437
        %v2439 = vpop.f32.mrb[0].mxu0
        %v2440 = vadd.f32 %v2056, %v2439
        %2441 = vmatprep.mubr.bf16.mxu0 %v1972
        %2442 = vmatmul.mubr.bf16.gmra.mrb[0].mxu0 %v1971
        %v2443 = vpop.f32.mrb[0].mxu0
        %v2444 = vadd.f32 %v2052, %v2443
        %v2445 = vpop.f32.mrb[0].mxu0
        %v2446 = vadd.f32 %v2056, %v2445
        %v2447 = vpop.f32.mrb[0].mxu0
        %v2448 = vadd.f32 %v2052, %v2447
        %v2449 = vpop.f32.mrb[0].mxu0
        %v2450 = vadd.f32 %v2056, %v2449
        %2451 = vmatprep.mubr.bf16.mxu0 %v1974
        %2452 = vmatmul.mubr.bf16.gmra.mrb[0].mxu0 %v1973
        %v2453 = vpop.f32.mrb[0].mxu0
        %v2454 = vadd.f32 %v2052, %v2453
        %v2455 = vpop.f32.mrb[0].mxu0
        %v2456 = vadd.f32 %v2056, %v2455
        %v2457 = vpop.f32.mrb[0].mxu0
        %v2458 = vadd.f32 %v2052, %v2457
        %v2459 = vpop.f32.mrb[0].mxu0
        %v2460 = vadd.f32 %v2056, %v2459
        %2461 = vmatprep.mubr.bf16.mxu0 %v1976
        %2462 = vmatmul.mubr.bf16.gmra.mrb[0].mxu0 %v1975
        %v2463 = vpop.f32.mrb[0].mxu0
        %v2464 = vadd.f32 %v2052, %v2463
        %v2465 = vpop.f32.mrb[0].mxu0
        %v2466 = vadd.f32 %v2056, %v2465
        %v2467 = vpop.f32.mrb[0].mxu0
        %v2468 = vadd.f32 %v2052, %v2467
        %v2469 = vpop.f32.mrb[0].mxu0
        %v2470 = vadd.f32 %v2056, %v2469
        %2471 = vmatprep.mubr.bf16.mxu0 %v1978
        %2472 = vmatmul.mubr.bf16.gmra.mrb[0].mxu0 %v1977
        %v2473 = vpop.f32.mrb[0].mxu0
        %v2474 = vadd.f32 %v2052, %v2473
        %v2475 = vpop.f32.mrb[0].mxu0
        %v2476 = vadd.f32 %v2056, %v2475
        %v2477 = vpop.f32.mrb[0].mxu0
        %v2478 = vadd.f32 %v2052, %v2477
        %v2479 = vpop.f32.mrb[0].mxu0
        %v2480 = vadd.f32 %v2056, %v2479
        %2481 = vmatprep.mubr.bf16.mxu0 %v1980
        %2482 = vmatmul.mubr.bf16.gmra.mrb[0].mxu0 %v1979
        %v2483 = vpop.f32.mrb[0].mxu0
        %v2484 = vadd.f32 %v2052, %v2483
        %v2485 = vpop.f32.mrb[0].mxu0
        %v2486 = vadd.f32 %v2056, %v2485
        %v2487 = vpop.f32.mrb[0].mxu0
        %v2488 = vadd.f32 %v2052, %v2487
        %v2489 = vpop.f32.mrb[0].mxu0
        %v2490 = vadd.f32 %v2056, %v2489
        %2491 = vmatprep.mubr.bf16.mxu0 %v1982
        %2492 = vmatmul.mubr.bf16.gmra.mrb[0].mxu0 %v1981
        %v2493 = vpop.f32.mrb[0].mxu0
        %v2494 = vadd.f32 %v2052, %v2493
        %v2495 = vpop.f32.mrb[0].mxu0
        %v2496 = vadd.f32 %v2056, %v2495
        %v2497 = vpop.f32.mrb[0].mxu0
        %v2498 = vadd.f32 %v2052, %v2497
        %v2499 = vpop.f32.mrb[0].mxu0
        %v2500 = vadd.f32 %v2056, %v2499
        %2501 = vdwg.mxu0
        %2502 = vmatprep.subr.bf16.mxu0 %v2264
        %2503 = vmatpush1.bf16.msra.mxu0 %v2263
        %2504 = vmatprep.subr.bf16.mxu0 %v2268
        %2505 = vmatpush1.bf16.msra.mxu0 %v2267
        %2506 = vmatprep.subr.bf16.mxu0 %v2272
        %2507 = vmatpush1.bf16.msra.mxu0 %v2271
        %2508 = vmatprep.subr.bf16.mxu0 %v2276
        %2509 = vmatpush1.bf16.msra.mxu0 %v2275
        %2510 = vmatprep.subr.bf16.mxu0 %v2280
        %2511 = vmatpush1.bf16.msra.mxu0 %v2279
        %2512 = vmatprep.subr.bf16.mxu0 %v2284
        %2513 = vmatpush1.bf16.msra.mxu0 %v2283
        %2514 = vmatprep.subr.bf16.mxu0 %v2288
        %2515 = vmatpush1.bf16.msra.mxu0 %v2287
        %2516 = vmatprep.subr.bf16.mxu0 %v2292
        %2517 = vmatpush1.bf16.msra.mxu0 %v2291
        %2518 = vmatprep.subr.bf16.mxu0 %v2296
        %2519 = vmatpush1.bf16.msra.mxu0 %v2295
        %2520 = vmatprep.subr.bf16.mxu0 %v2300
        %2521 = vmatpush1.bf16.msra.mxu0 %v2299
        %2522 = vmatprep.subr.bf16.mxu0 %v2304
        %2523 = vmatpush1.bf16.msra.mxu0 %v2303
        %2524 = vmatprep.subr.bf16.mxu0 %v2308
        %2525 = vmatpush1.bf16.msra.mxu0 %v2307
        %2526 = vmatprep.subr.bf16.mxu0 %v2312
        %2527 = vmatpush1.bf16.msra.mxu0 %v2311
        %2528 = vmatprep.subr.bf16.mxu0 %v2316
        %2529 = vmatpush1.bf16.msra.mxu0 %v2315
        %2530 = vmatprep.subr.bf16.mxu0 %v2320
        %2531 = vmatpush1.bf16.msra.mxu0 %v2319
        %2532 = vmatprep.subr.bf16.mxu0 %v2324
        %2533 = vmatpush1.bf16.msra.mxu0 %v2323
        %2534 = vmatprep.mubr.bf16.mxu0 %v1968
        %2535 = vmatmul.mubr.bf16.gmra.mrb[0].mxu0 %v1967
        %v2536 = vpop.f32.mrb[0].mxu0
        %v2537 = vadd.f32 %v2060, %v2536
        %v2538 = vpop.f32.mrb[0].mxu0
        %v2539 = vadd.f32 %v2064, %v2538
        %v2540 = vpop.f32.mrb[0].mxu0
        %v2541 = vadd.f32 %v2060, %v2540
        %v2542 = vpop.f32.mrb[0].mxu0
        %v2543 = vadd.f32 %v2064, %v2542
        %2544 = vmatprep.mubr.bf16.mxu0 %v1970
        %2545 = vmatmul.mubr.bf16.gmra.mrb[0].mxu0 %v1969
        %v2546 = vpop.f32.mrb[0].mxu0
        %v2547 = vadd.f32 %v2060, %v2546
        %v2548 = vpop.f32.mrb[0].mxu0
        %v2549 = vadd.f32 %v2064, %v2548
        %v2550 = vpop.f32.mrb[0].mxu0
        %v2551 = vadd.f32 %v2060, %v2550
        %v2552 = vpop.f32.mrb[0].mxu0
        %v2553 = vadd.f32 %v2064, %v2552
        %2554 = vmatprep.mubr.bf16.mxu0 %v1972
        %2555 = vmatmul.mubr.bf16.gmra.mrb[0].mxu0 %v1971
        %v2556 = vpop.f32.mrb[0].mxu0
        %v2557 = vadd.f32 %v2060, %v2556
        %v2558 = vpop.f32.mrb[0].mxu0
        %v2559 = vadd.f32 %v2064, %v2558
        %v2560 = vpop.f32.mrb[0].mxu0
        %v2561 = vadd.f32 %v2060, %v2560
        %v2562 = vpop.f32.mrb[0].mxu0
        %v2563 = vadd.f32 %v2064, %v2562
        %2564 = vmatprep.mubr.bf16.mxu0 %v1974
        %2565 = vmatmul.mubr.bf16.gmra.mrb[0].mxu0 %v1973
        %v2566 = vpop.f32.mrb[0].mxu0
        %v2567 = vadd.f32 %v2060, %v2566
        %v2568 = vpop.f32.mrb[0].mxu0
        %v2569 = vadd.f32 %v2064, %v2568
        %v2570 = vpop.f32.mrb[0].mxu0
        %v2571 = vadd.f32 %v2060, %v2570
        %v2572 = vpop.f32.mrb[0].mxu0
        %v2573 = vadd.f32 %v2064, %v2572
        %2574 = vmatprep.mubr.bf16.mxu0 %v1976
        %2575 = vmatmul.mubr.bf16.gmra.mrb[0].mxu0 %v1975
        %v2576 = vpop.f32.mrb[0].mxu0
        %v2577 = vadd.f32 %v2060, %v2576
        %v2578 = vpop.f32.mrb[0].mxu0
        %v2579 = vadd.f32 %v2064, %v2578
        %v2580 = vpop.f32.mrb[0].mxu0
        %v2581 = vadd.f32 %v2060, %v2580
        %v2582 = vpop.f32.mrb[0].mxu0
        %v2583 = vadd.f32 %v2064, %v2582
        %2584 = vmatprep.mubr.bf16.mxu0 %v1978
        %2585 = vmatmul.mubr.bf16.gmra.mrb[0].mxu0 %v1977
        %v2586 = vpop.f32.mrb[0].mxu0
        %v2587 = vadd.f32 %v2060, %v2586
        %v2588 = vpop.f32.mrb[0].mxu0
        %v2589 = vadd.f32 %v2064, %v2588
        %v2590 = vpop.f32.mrb[0].mxu0
        %v2591 = vadd.f32 %v2060, %v2590
        %v2592 = vpop.f32.mrb[0].mxu0
        %v2593 = vadd.f32 %v2064, %v2592
        %2594 = vmatprep.mubr.bf16.mxu0 %v1980
        %2595 = vmatmul.mubr.bf16.gmra.mrb[0].mxu0 %v1979
        %v2596 = vpop.f32.mrb[0].mxu0
        %v2597 = vadd.f32 %v2060, %v2596
        %v2598 = vpop.f32.mrb[0].mxu0
        %v2599 = vadd.f32 %v2064, %v2598
        %v2600 = vpop.f32.mrb[0].mxu0
        %v2601 = vadd.f32 %v2060, %v2600
        %v2602 = vpop.f32.mrb[0].mxu0
        %v2603 = vadd.f32 %v2064, %v2602
        %2604 = vmatprep.mubr.bf16.mxu0 %v1982
        %2605 = vmatmul.mubr.bf16.gmra.mrb[0].mxu0 %v1981
        %v2606 = vpop.f32.mrb[0].mxu0
        %v2607 = vadd.f32 %v2060, %v2606
        %v2608 = vpop.f32.mrb[0].mxu0
        %v2609 = vadd.f32 %v2064, %v2608
        %v2610 = vpop.f32.mrb[0].mxu0
        %v2611 = vadd.f32 %v2060, %v2610
        %v2612 = vpop.f32.mrb[0].mxu0
        %v2613 = vadd.f32 %v2064, %v2612
        %2614 = vdwg.mxu0
        %2615 = vst [vmem:[%s440] sm:$0xff] %v2424
        %2616 = vst [vmem:[%s440 + $0x8] sm:$0xff] %v2426
        %2617 = vst [vmem:[%s440 + $0x10] sm:$0xff] %v2537
        %2618 = vst [vmem:[%s440 + $0x18] sm:$0xff] %v2539
        %2619 = vst [vmem:[%s440 + $0x20] sm:$0xff] %v2428
        %2620 = vst [vmem:[%s440 + $0x28] sm:$0xff] %v2430
        %2621 = vst [vmem:[%s440 + $0x30] sm:$0xff] %v2541
        %2622 = vst [vmem:[%s440 + $0x38] sm:$0xff] %v2543
        %2623 = vst [vmem:[%s440 + $0x40] sm:$0xff] %v2434
        %2624 = vst [vmem:[%s440 + $0x48] sm:$0xff] %v2436
        %2625 = vst [vmem:[%s440 + $0x50] sm:$0xff] %v2547
        %2626 = vst [vmem:[%s440 + $0x58] sm:$0xff] %v2549
        %2627 = vst [vmem:[%s440 + $0x60] sm:$0xff] %v2438
        %2628 = vst [vmem:[%s440 + $0x68] sm:$0xff] %v2440
        %2629 = vst [vmem:[%s440 + $0x70] sm:$0xff] %v2551
        %2630 = vst [vmem:[%s440 + $0x78] sm:$0xff] %v2553
        %2631 = vst [vmem:[%s440 + $0x80] sm:$0xff] %v2444
        %2632 = vst [vmem:[%s440 + $0x88] sm:$0xff] %v2446
        %2633 = vst [vmem:[%s440 + $0x90] sm:$0xff] %v2557
        %2634 = vst [vmem:[%s440 + $0x98] sm:$0xff] %v2559
        %2635 = vst [vmem:[%s440 + $0xa0] sm:$0xff] %v2448
        %2636 = vst [vmem:[%s440 + $0xa8] sm:$0xff] %v2450
        %2637 = vst [vmem:[%s440 + $0xb0] sm:$0xff] %v2561
        %2638 = vst [vmem:[%s440 + $0xb8] sm:$0xff] %v2563
        %2639 = vst [vmem:[%s440 + $0xc0] sm:$0xff] %v2454
        %2640 = vst [vmem:[%s440 + $0xc8] sm:$0xff] %v2456
        %2641 = vst [vmem:[%s440 + $0xd0] sm:$0xff] %v2567
        %2642 = vst [vmem:[%s440 + $0xd8] sm:$0xff] %v2569
        %2643 = vst [vmem:[%s440 + $0xe0] sm:$0xff] %v2458
        %2644 = vst [vmem:[%s440 + $0xe8] sm:$0xff] %v2460
        %2645 = vst [vmem:[%s440 + $0xf0] sm:$0xff] %v2571
        %2646 = vst [vmem:[%s440 + $0xf8] sm:$0xff] %v2573
        %2647 = vst [vmem:[%s440 + $0x100] sm:$0xff] %v2464
        %2648 = vst [vmem:[%s440 + $0x108] sm:$0xff] %v2466
        %2649 = vst [vmem:[%s440 + $0x110] sm:$0xff] %v2577
        %2650 = vst [vmem:[%s440 + $0x118] sm:$0xff] %v2579
        %2651 = vst [vmem:[%s440 + $0x120] sm:$0xff] %v2468
        %2652 = vst [vmem:[%s440 + $0x128] sm:$0xff] %v2470
        %2653 = vst [vmem:[%s440 + $0x130] sm:$0xff] %v2581
        %2654 = vst [vmem:[%s440 + $0x138] sm:$0xff] %v2583
        %2655 = vst [vmem:[%s440 + $0x140] sm:$0xff] %v2474
        %2656 = vst [vmem:[%s440 + $0x148] sm:$0xff] %v2476
        %2657 = vst [vmem:[%s440 + $0x150] sm:$0xff] %v2587
        %2658 = vst [vmem:[%s440 + $0x158] sm:$0xff] %v2589
        %2659 = vst [vmem:[%s440 + $0x160] sm:$0xff] %v2478
        %2660 = vst [vmem:[%s440 + $0x168] sm:$0xff] %v2480
        %2661 = vst [vmem:[%s440 + $0x170] sm:$0xff] %v2591
        %2662 = vst [vmem:[%s440 + $0x178] sm:$0xff] %v2593
        %2663 = vst [vmem:[%s440 + $0x180] sm:$0xff] %v2484
        %2664 = vst [vmem:[%s440 + $0x188] sm:$0xff] %v2486
        %2665 = vst [vmem:[%s440 + $0x190] sm:$0xff] %v2597
        %2666 = vst [vmem:[%s440 + $0x198] sm:$0xff] %v2599
        %2667 = vst [vmem:[%s440 + $0x1a0] sm:$0xff] %v2488
        %2668 = vst [vmem:[%s440 + $0x1a8] sm:$0xff] %v2490
        %2669 = vst [vmem:[%s440 + $0x1b0] sm:$0xff] %v2601
        %2670 = vst [vmem:[%s440 + $0x1b8] sm:$0xff] %v2603
        %2671 = vst [vmem:[%s440 + $0x1c0] sm:$0xff] %v2494
        %2672 = vst [vmem:[%s440 + $0x1c8] sm:$0xff] %v2496
        %2673 = vst [vmem:[%s440 + $0x1d0] sm:$0xff] %v2607
        %2674 = vst [vmem:[%s440 + $0x1d8] sm:$0xff] %v2609
        %2675 = vst [vmem:[%s440 + $0x1e0] sm:$0xff] %v2498
        %2676 = vst [vmem:[%s440 + $0x1e8] sm:$0xff] %v2500
        %2677 = vst [vmem:[%s440 + $0x1f0] sm:$0xff] %v2611
        %2678 = vst [vmem:[%s440 + $0x1f8] sm:$0xff] %v2613
        %s2679 = sand.u32 %s235, 1
        %s2680 = scalar_lea.sflag [#allocation4], %s2679
        %s2681 = sand.u32 %s235, 1
        %s2682 = smul.addr %s2681, 512
        %s2683 = scalar_lea.vmem [#allocation11], %s2682
        %s2684 = sand.u32 %s261, 1
        %s2685 = scalar_lea.sflag [#allocation13], %s2684
        %s2686 = sand.u32 %s261, 1
        %s2687 = smul.addr %s2686, 128
        %s2688 = scalar_lea.vmem [#allocation12], %s2687
        // Predicated region
        $region77: #{tpu_custom_call.1} parent=55 // pred_check
          %p2689 = pneg %p245
        $region78: #{tpu_custom_call.1} parent=55 // pred_check_branch
          %2691 = sbr.rel (%p2689) target = $region80
        $region79: #{tpu_custom_call.1} parent=55 // pred_region
          %s2692 = smul.u32 16, %s33
          %s2694 = ssub.s32 8192, 8192
          %2695 = vsyncadd %s2680, %s2694
          %s2696 = smul.addr %s2692, 4
          %s2697 = smul.addr %s2696, 128
          %s2698 = scalar_lea.hbm %s9, %s2697
          %s2699 = sshll.u32 %s2683, 4
          %s2700 = int_to_ptr.vmem [resolvable:$true] %s2699
          %2705 = dma.vmem_to_hbm [thread:$0]  %s2700, 8192, %s2698, %s2680, 512, 512, 32
        $region80: #{tpu_custom_call.1} parent=55 // pred_fallthru
          _
        // Predicated region
        $region81: #{tpu_custom_call.1} parent=55 // pred_check
          %p2706 = pneg %p271
        $region82: #{tpu_custom_call.1} parent=55 // pred_check_branch
          %2708 = sbr.rel (%p2706) target = $region84
        $region83: #{tpu_custom_call.1} parent=55 // pred_region
          %s2709 = smul.u32 16, %s33
          %s2711 = ssub.s32 2048, 2048
          %2712 = vsyncadd %s2685, %s2711
          %s2713 = smul.addr %s2709, 128
          %s2714 = scalar_lea.hbm %s10, %s2713
          %s2715 = sshll.u32 %s2688, 4
          %s2716 = int_to_ptr.vmem [resolvable:$true] %s2715
          %2721 = dma.vmem_to_hbm [thread:$0]  %s2716, 2048, %s2714, %s2685, 128, 128, 8
        $region84: #{tpu_custom_call.1} parent=55 // pred_fallthru
          _
      $region56: #{tpu_custom_call.1} parent=5 // pred_fallthru
        _
      %p2722 = scmp.le.s32.totalorder 2, %s28
      // Predicated region
      $region85: #{tpu_custom_call.1} parent=5 // pred_check
        %p2723 = pneg %p2722
      $region86: #{tpu_custom_call.1} parent=5 // pred_check_branch
        %2725 = sbr.rel (%p2723) target = $region88
      $region87: #{tpu_custom_call.1} parent=5 // pred_region
        %s2726 = ssub.s32 %s28, 2
        // Predicated region
        $region89: #{tpu_custom_call.1} parent=87 // pred_check
          %p2727 = pneg %p251
        $region90: #{tpu_custom_call.1} parent=87 // pred_check_branch
          %2729 = sbr.rel (%p2727) target = $region92
        $region91: #{tpu_custom_call.1} parent=87 // pred_region
          %s2730 = sand.u32 %s236, 1
          %s2731 = scalar_lea.sflag [#allocation4], %s2730
          %s2732 = sand.u32 %s236, 1
          %s2733 = smul.addr %s2732, 512
          %s2734 = scalar_lea.vmem [#allocation11], %s2733
          %2735 = dma.done %s2731, 8192
        $region92: #{tpu_custom_call.1} parent=87 // pred_fallthru
          _
        // Predicated region
        $region93: #{tpu_custom_call.1} parent=87 // pred_check
          %p2736 = pneg %p277
        $region94: #{tpu_custom_call.1} parent=87 // pred_check_branch
          %2738 = sbr.rel (%p2736) target = $region96
        $region95: #{tpu_custom_call.1} parent=87 // pred_region
          %s2739 = sand.u32 %s262, 1
          %s2740 = scalar_lea.sflag [#allocation13], %s2739
          %s2741 = sand.u32 %s262, 1
          %s2742 = smul.addr %s2741, 128
          %s2743 = scalar_lea.vmem [#allocation12], %s2742
          %2744 = dma.done %s2740, 2048
        $region96: #{tpu_custom_call.1} parent=87 // pred_fallthru
          _
      $region88: #{tpu_custom_call.1} parent=5 // pred_fallthru
        _
    $region6: #{tpu_custom_call.1} parent=1 // loop_footer
      %s32 = sadd.s32 1, %s28
    $region7: #{tpu_custom_call.1} parent=1 // loop_footer_branch
      %27 = sbr.rel target = $region3
    $region8: #{tpu_custom_call.1} parent=1 // loop_exit
      _
    %2745 = vsyncpa [#allocation3], 1
    %s2746 = scalar_lea.sflag [#allocation3], 1
    %2747 = vsyncpa %s2746, 1
    %2748 = vsyncpa [#allocation6], 1
    %2749 = vsyncpa [#allocation9], 1
    %2750 = vsyncpa [#allocation4], 1
    %s2751 = scalar_lea.sflag [#allocation4], 1
    %2752 = vsyncpa %s2751, 1
    %2753 = vsyncpa [#allocation13], 1
    %s2754 = scalar_lea.sflag [#allocation13], 1
    %2755 = vsyncpa %s2754, 1

</llo_original>
